<compile_context>
chip_gen: v6e
topology: v6e:2x2x1
jax: 0.10.0
libtpu: 0.0.40
codegen_flags: <defaults>
</compile_context>

<pallas_src>
import jax
import jax.numpy as jnp
from jax.experimental import pallas as pl
from jax.experimental.pallas import tpu as pltpu


# ----------------------------------------------------------------------------
# Kernel: whole sequence in one invocation.
# ----------------------------------------------------------------------------
def _qnet_rnn_kernel(
    x_ref,                 # (T*B, D_in)  bf16  -- all timesteps, flattened
    h0_ref,                # (B, G)       f32   -- initial hidden (padded to G lanes)
    w1_ref, b1_ref,        # (D_in, G) bf16 / (1, G)   f32
    wih_ref, bih_ref,      # (G, 3G)   bf16 / (1, 3G)  f32   gates [r|z|n], 128-aligned
    whh_ref, bhh_ref,      # (G, 3G)   bf16 / (1, 3G)  f32
    w2_ref, b2_ref,        # (G, A_pad) bf16 / (1, A_pad) f32
    q_ref,                 # (T*B, A_pad) f32
    h_ref,                 # (B, G)       f32   -- final hidden state
    hs_ref,                # scratch (T*B, G) f32 -- per-step hidden states for fc2
):
    TB, _ = x_ref.shape
    B, G = h0_ref.shape
    T = TB // B

    # ---- Hoisted non-recurrent work: fc1+ReLU and input gate projection ----
    a1 = jnp.dot(x_ref[...], w1_ref[...],
                 preferred_element_type=jnp.float32) + b1_ref[...]
    a1 = jnp.maximum(a1, 0.0)                                   # (T*B, G) f32
    gi_all = jnp.dot(a1.astype(jnp.bfloat16), wih_ref[...],
                     preferred_element_type=jnp.float32) + bih_ref[...]  # (T*B, 3G)

    # ---- Recurrent loop: one matmul + gate math per step, h carried in vregs ----
    whh = whh_ref[...]                                          # resident (G, 3G) bf16
    bhh = jnp.broadcast_to(bhh_ref[...], (B, 3 * G))            # hoisted broadcast
    h = h0_ref[...]                                             # (B, G) f32

    # T is small and static: plain unrolled Python loop -> all slices are static
    # and 128-lane / 8-sublane aligned (free).
    for t in range(T):
        gi = gi_all[t * B:(t + 1) * B, :]                       # (B, 3G) static slice
        gh = jnp.dot(h.astype(jnp.bfloat16), whh,
                     preferred_element_type=jnp.float32) + bhh  # (B, 3G)
        r = jax.nn.sigmoid(gi[:, 0:G] + gh[:, 0:G])
        z = jax.nn.sigmoid(gi[:, G:2 * G] + gh[:, G:2 * G])
        n = jnp.tanh(gi[:, 2 * G:3 * G] + r * gh[:, 2 * G:3 * G])
        h = (1.0 - z) * n + z * h
        hs_ref[t * B:(t + 1) * B, :] = h                        # stash for batched fc2

    h_ref[...] = h

    # ---- Hoisted fc2 over all T*B hidden states: one lane-dense store ----
    q_ref[...] = jnp.dot(hs_ref[...].astype(jnp.bfloat16), w2_ref[...],
                         preferred_element_type=jnp.float32) + b2_ref[...]


def q_network_rnn_forward(x_seq, h0, params):
    """Runs T steps of fc1->ReLU->GRUCell->fc2 in one pallas_call.

    x_seq: (T, B, D_in) f32, h0: (B, H) f32.
    Returns (Q: (T, B, action_dim) f32, h_final: (B, H) f32).
    """
    T, B, D_in = x_seq.shape
    H = params["hidden_dim"]
    A = params["action_dim"]
    G = params["w1"].shape[1]          # padded hidden width (multiple of 128)
    A_pad = params["w2"].shape[1]

    # Pre-cast x to bf16 (halves the x DMA, removes in-kernel casts); pad h0 lanes.
    x_flat = x_seq.reshape(T * B, D_in).astype(jnp.bfloat16)
    h0_pad = jnp.zeros((B, G), jnp.float32).at[:, :H].set(h0)

    operands = (
        x_flat, h0_pad,
        params["w1"], params["b1"],
        params["wih"], params["bih"],
        params["whh"], params["bhh"],
        params["w2"], params["b2"],
    )

    def full(shape):
        return pl.BlockSpec(shape, lambda i, _s=shape: (0,) * len(_s))

    flops = 2 * T * B * (D_in * G + 2 * G * 3 * G + G * A_pad)
    transcendentals = T * B * 3 * G
    bytes_accessed = sum(int(a.size) * a.dtype.itemsize for a in operands)
    bytes_accessed += (T * B * A_pad + B * G) * 4

    # TODO(synk): for v7x megacore, shard independent agent/env groups over a
    #             leading "parallel" grid axis; the time recurrence stays serial
    #             per core.
    # TODO(synk): if H is scaled up (e.g. >~2k), resident bf16 GRU weights
    #             approach the v7x 64 MiB VMEM limit: tile W_ih/W_hh over the 3H
    #             axis or raise vmem_limit_bytes. At H=32 everything is <1 MB.
    q_flat, h_pad = pl.pallas_call(
        _qnet_rnn_kernel,
        out_shape=(
            jax.ShapeDtypeStruct((T * B, A_pad), jnp.float32),
            jax.ShapeDtypeStruct((B, G), jnp.float32),
        ),
        grid=(1,),
        in_specs=[full(a.shape) for a in operands],
        out_specs=(full((T * B, A_pad)), full((B, G))),
        scratch_shapes=[pltpu.VMEM((T * B, G), jnp.float32)],
        compiler_params=pltpu.CompilerParams(
            dimension_semantics=("arbitrary",)),
        cost_estimate=pl.CostEstimate(
            flops=flops, transcendentals=transcendentals,
            bytes_accessed=bytes_accessed),
    )(*operands)

    return q_flat[:, :A].reshape(T, B, A), h_pad[:, :H]


# ----------------------------------------------------------------------------
# Parameter init matching orthogonal_init (orthogonal weights on the full
# PyTorch-shaped matrices, zero biases), repacked for the kernel:
#   * transposed to (in, out)
#   * hidden/gate widths padded to G = round_up(H, 128); each GRU gate starts
#     at its own 128-lane boundary (cols 0 / G / 2G)
#   * fc2 padded to A_pad = round_up(A, 128) output lanes
#   * weights bf16, biases f32
# ----------------------------------------------------------------------------
def _round_up(n, m):
    return ((n + m - 1) // m) * m


def _orthogonal(key, rows, cols, gain=1.0):
    big, small = max(rows, cols), min(rows, cols)
    a = jax.random.normal(key, (big, small), dtype=jnp.float32)
    q, r = jnp.linalg.qr(a)
    q = q * jnp.sign(jnp.diag(r))
    if rows < cols:
        q = q.T
    return gain * q[:rows, :cols]


def make_params(key, input_dim, hidden_dim, action_dim):
    keys = jax.random.split(key, 4)
    H = hidden_dim
    G = _round_up(max(H, 128), 128)
    A_pad = _round_up(max(action_dim, 128), 128)

    # fc1: PyTorch (H, D_in) orthogonal -> transpose -> pad output cols to G
    w1d = _orthogonal(keys[0], H, input_dim).T                       # (D_in, H)
    w1 = jnp.zeros((input_dim, G), jnp.float32).at[:, :H].set(w1d)
    b1 = jnp.zeros((1, G), jnp.float32)

    # GRUCell weight_ih / weight_hh: PyTorch (3H, H) orthogonal on the whole
    # parameter -> transpose -> (H, 3H) col blocks [r|z|n]; re-pack each gate at
    # a 128-lane boundary and pad input rows to G.
    def pack_gru(k):
        wd = _orthogonal(k, 3 * H, H).T                              # (H, 3H)
        w = jnp.zeros((G, 3 * G), jnp.float32)
        for g in range(3):
            w = w.at[:H, g * G:g * G + H].set(wd[:, g * H:(g + 1) * H])
        return w

    wih = pack_gru(keys[1])
    whh = pack_gru(keys[2])
    bih = jnp.zeros((1, 3 * G), jnp.float32)
    bhh = jnp.zeros((1, 3 * G), jnp.float32)

    # fc2: PyTorch (A, H) orthogonal -> transpose -> pad to (G, A_pad)
    w2d = _orthogonal(keys[3], action_dim, H).T                      # (H, A)
    w2 = jnp.zeros((G, A_pad), jnp.float32).at[:H, :action_dim].set(w2d)
    b2 = jnp.zeros((1, A_pad), jnp.float32)

    return dict(
        w1=w1.astype(jnp.bfloat16), b1=b1,
        wih=wih.astype(jnp.bfloat16), bih=bih,
        whh=whh.astype(jnp.bfloat16), bhh=bhh,
        w2=w2.astype(jnp.bfloat16), b2=b2,
        hidden_dim=H, action_dim=action_dim)


# Pure-JAX reference with the same numerics (bf16 matmul inputs, f32 math).
# NOTE: validates self-consistency of the kernel, not bit-fidelity to the fp32
# PyTorch module (bf16 weights drift slightly over long T; fine for an RL Q-net).
def _reference(x_seq, h0, p):
    T, B, _ = x_seq.shape
    H, A = p["hidden_dim"], p["action_dim"]
    G = p["w1"].shape[1]

    def mm(a, w):
        return jnp.dot(a.astype(jnp.bfloat16), w,
                       preferred_element_type=jnp.float32)

    h = jnp.zeros((B, G), jnp.float32).at[:, :H].set(h0)
    x = x_seq.astype(jnp.bfloat16)
    qs = []
    for t in range(T):
        a1 = jnp.maximum(mm(x[t], p["w1"]) + p["b1"], 0.0)
        gi = mm(a1, p["wih"]) + p["bih"]
        gh = mm(h, p["whh"]) + p["bhh"]
        r = jax.nn.sigmoid(gi[:, 0:G] + gh[:, 0:G])
        z = jax.nn.sigmoid(gi[:, G:2 * G] + gh[:, G:2 * G])
        n = jnp.tanh(gi[:, 2 * G:3 * G] + r * gh[:, 2 * G:3 * G])
        h = (1.0 - z) * n + z * h
        qs.append((mm(h, p["w2"]) + p["b2"])[:, :A])
    return jnp.stack(qs), h[:, :H]


if __name__ == "__main__":
    # T timesteps, batch B, input_dim, rnn_hidden_dim, action_dim
    T, B, D_IN, H, A = 8, 8, 16, 32, 8

    key = jax.random.PRNGKey(0)
    k_x, k_h, k_p = jax.random.split(key, 3)
    x_seq = jax.random.normal(k_x, (T, B, D_IN), dtype=jnp.float32)
    h0 = jax.random.normal(k_h, (B, H), dtype=jnp.float32)   # self.rnn_hidden
    params = make_params(k_p, D_IN, H, A)

    q, h_new = q_network_rnn_forward(x_seq, h0, params)
    q = jax.block_until_ready(q)
    h_new = jax.block_until_ready(h_new)

    q_ref, h_ref = _reference(x_seq, h0, params)
    assert q.shape == (T, B, A) and h_new.shape == (B, H)
    assert jnp.allclose(q, q_ref, atol=1e-3, rtol=1e-3), \
        f"Q mismatch, max abs diff {jnp.max(jnp.abs(q - q_ref))}"
    assert jnp.allclose(h_new, h_ref, atol=1e-3, rtol=1e-3), \
        f"h mismatch, max abs diff {jnp.max(jnp.abs(h_new - h_ref))}"

    print("KERNEL_OK")
</pallas_src>

<mosaic_0001>
module attributes {stable_mosaic.version = 11 : i64} {
  func.func @_qnet_rnn_kernel(%arg0: i32, %arg1: memref<64x16xbf16, #tpu.memory_space<vmem>>, %arg2: memref<8x128xf32, #tpu.memory_space<vmem>>, %arg3: memref<16x128xbf16, #tpu.memory_space<vmem>>, %arg4: memref<1x128xf32, #tpu.memory_space<vmem>>, %arg5: memref<128x384xbf16, #tpu.memory_space<vmem>>, %arg6: memref<1x384xf32, #tpu.memory_space<vmem>>, %arg7: memref<128x384xbf16, #tpu.memory_space<vmem>>, %arg8: memref<1x384xf32, #tpu.memory_space<vmem>>, %arg9: memref<128x128xbf16, #tpu.memory_space<vmem>>, %arg10: memref<1x128xf32, #tpu.memory_space<vmem>>, %arg11: memref<64x128xf32, #tpu.memory_space<vmem>>, %arg12: memref<8x128xf32, #tpu.memory_space<vmem>>, %arg13: memref<64x128xf32, #tpu.memory_space<vmem>>) attributes {dimension_semantics = [#tpu.dimension_semantics<arbitrary>], iteration_bounds = array<i64: 1>, scalar_prefetch = 0 : i64, scratch_operands = 1 : i64, tpu.core_type = #tpu.core_type<tc>, window_params = [{pipeline_mode = #tpu.pipeline_mode<synchronous>, transform_indices = @transform_0, window_bounds = array<i64: 64, 16>}, {pipeline_mode = #tpu.pipeline_mode<synchronous>, transform_indices = @transform_1, window_bounds = array<i64: 8, 128>}, {pipeline_mode = #tpu.pipeline_mode<synchronous>, transform_indices = @transform_2, window_bounds = array<i64: 16, 128>}, {pipeline_mode = #tpu.pipeline_mode<synchronous>, transform_indices = @transform_3, window_bounds = array<i64: 1, 128>}, {pipeline_mode = #tpu.pipeline_mode<synchronous>, transform_indices = @transform_4, window_bounds = array<i64: 128, 384>}, {pipeline_mode = #tpu.pipeline_mode<synchronous>, transform_indices = @transform_5, window_bounds = array<i64: 1, 384>}, {pipeline_mode = #tpu.pipeline_mode<synchronous>, transform_indices = @transform_6, window_bounds = array<i64: 128, 384>}, {pipeline_mode = #tpu.pipeline_mode<synchronous>, transform_indices = @transform_7, window_bounds = array<i64: 1, 384>}, {pipeline_mode = #tpu.pipeline_mode<synchronous>, transform_indices = @transform_8, window_bounds = array<i64: 128, 128>}, {pipeline_mode = #tpu.pipeline_mode<synchronous>, transform_indices = @transform_9, window_bounds = array<i64: 1, 128>}, {pipeline_mode = #tpu.pipeline_mode<synchronous>, transform_indices = @transform_10, window_bounds = array<i64: 64, 128>}, {pipeline_mode = #tpu.pipeline_mode<synchronous>, transform_indices = @transform_11, window_bounds = array<i64: 8, 128>}]} {
    %c0 = arith.constant 0 : index
    %c0_0 = arith.constant 0 : index
    %0 = vector.load %arg1[%c0, %c0_0] : memref<64x16xbf16, #tpu.memory_space<vmem>>, vector<64x16xbf16>
    %c0_1 = arith.constant 0 : index
    %c0_2 = arith.constant 0 : index
    %1 = vector.load %arg3[%c0_1, %c0_2] : memref<16x128xbf16, #tpu.memory_space<vmem>>, vector<16x128xbf16>
    %cst = arith.constant dense<0.000000e+00> : vector<64x128xf32>
    %2 = tpu.matmul %0, %1, %cst {dimension_numbers = #tpu.dot_dimension_numbers<[1], [0], [0], [1], [0, 0, 1, 1], [], []>} : vector<64x16xbf16>, vector<16x128xbf16>, vector<64x128xf32> -> vector<64x128xf32>
    %c0_3 = arith.constant 0 : index
    %c0_4 = arith.constant 0 : index
    %3 = vector.load %arg4[%c0_3, %c0_4] : memref<1x128xf32, #tpu.memory_space<vmem>>, vector<1x128xf32>
    %4 = vector.broadcast %3 : vector<1x128xf32> to vector<64x128xf32>
    %5 = arith.addf %2, %4 : vector<64x128xf32>
    %cst_5 = arith.constant 0.000000e+00 : f32
    %6 = vector.broadcast %cst_5 : f32 to vector<64x128xf32>
    %7 = arith.maximumf %5, %6 : vector<64x128xf32>
    %8 = arith.truncf %7 : vector<64x128xf32> to vector<64x128xbf16>
    %c0_6 = arith.constant 0 : index
    %c0_7 = arith.constant 0 : index
    %9 = vector.load %arg5[%c0_6, %c0_7] : memref<128x384xbf16, #tpu.memory_space<vmem>>, vector<128x384xbf16>
    %cst_8 = arith.constant dense<0.000000e+00> : vector<64x384xf32>
    %10 = tpu.matmul %8, %9, %cst_8 {dimension_numbers = #tpu.dot_dimension_numbers<[1], [0], [0], [1], [0, 0, 1, 1], [], []>} : vector<64x128xbf16>, vector<128x384xbf16>, vector<64x384xf32> -> vector<64x384xf32>
    %c0_9 = arith.constant 0 : index
    %c0_10 = arith.constant 0 : index
    %11 = vector.load %arg6[%c0_9, %c0_10] : memref<1x384xf32, #tpu.memory_space<vmem>>, vector<1x384xf32>
    %12 = vector.broadcast %11 : vector<1x384xf32> to vector<64x384xf32>
    %13 = arith.addf %10, %12 : vector<64x384xf32>
    %c0_11 = arith.constant 0 : index
    %c0_12 = arith.constant 0 : index
    %14 = vector.load %arg7[%c0_11, %c0_12] : memref<128x384xbf16, #tpu.memory_space<vmem>>, vector<128x384xbf16>
    %c0_13 = arith.constant 0 : index
    %c0_14 = arith.constant 0 : index
    %15 = vector.load %arg8[%c0_13, %c0_14] : memref<1x384xf32, #tpu.memory_space<vmem>>, vector<1x384xf32>
    %16 = vector.shape_cast %15 : vector<1x384xf32> to vector<1x384xf32>
    %17 = vector.broadcast %16 : vector<1x384xf32> to vector<8x384xf32>
    %c0_15 = arith.constant 0 : index
    %c0_16 = arith.constant 0 : index
    %18 = vector.load %arg2[%c0_15, %c0_16] : memref<8x128xf32, #tpu.memory_space<vmem>>, vector<8x128xf32>
    %19 = vector.extract_strided_slice %13 {offsets = [0, 0], sizes = [8, 384], strides = [1, 1]} : vector<64x384xf32> to vector<8x384xf32>
    %20 = arith.truncf %18 : vector<8x128xf32> to vector<8x128xbf16>
    %cst_17 = arith.constant dense<0.000000e+00> : vector<8x384xf32>
    %21 = tpu.matmul %20, %14, %cst_17 {dimension_numbers = #tpu.dot_dimension_numbers<[1], [0], [0], [1], [0, 0, 1, 1], [], []>} : vector<8x128xbf16>, vector<128x384xbf16>, vector<8x384xf32> -> vector<8x384xf32>
    %22 = arith.addf %21, %17 : vector<8x384xf32>
    %23 = vector.extract_strided_slice %19 {offsets = [0, 0], sizes = [8, 128], strides = [1, 1]} : vector<8x384xf32> to vector<8x128xf32>
    %24 = vector.extract_strided_slice %22 {offsets = [0, 0], sizes = [8, 128], strides = [1, 1]} : vector<8x384xf32> to vector<8x128xf32>
    %25 = arith.addf %23, %24 : vector<8x128xf32>
    %26 = arith.negf %25 : vector<8x128xf32>
    %27 = math.exp %26 : vector<8x128xf32>
    %cst_18 = arith.constant 1.000000e+00 : f32
    %28 = vector.broadcast %cst_18 : f32 to vector<8x128xf32>
    %29 = arith.addf %28, %27 : vector<8x128xf32>
    %30 = arith.divf %28, %29 : vector<8x128xf32>
    %31 = vector.extract_strided_slice %19 {offsets = [0, 128], sizes = [8, 128], strides = [1, 1]} : vector<8x384xf32> to vector<8x128xf32>
    %32 = vector.extract_strided_slice %22 {offsets = [0, 128], sizes = [8, 128], strides = [1, 1]} : vector<8x384xf32> to vector<8x128xf32>
    %33 = arith.addf %31, %32 : vector<8x128xf32>
    %34 = arith.negf %33 : vector<8x128xf32>
    %35 = math.exp %34 : vector<8x128xf32>
    %cst_19 = arith.constant 1.000000e+00 : f32
    %36 = vector.broadcast %cst_19 : f32 to vector<8x128xf32>
    %37 = arith.addf %36, %35 : vector<8x128xf32>
    %38 = arith.divf %36, %37 : vector<8x128xf32>
    %39 = vector.extract_strided_slice %19 {offsets = [0, 256], sizes = [8, 128], strides = [1, 1]} : vector<8x384xf32> to vector<8x128xf32>
    %40 = vector.extract_strided_slice %22 {offsets = [0, 256], sizes = [8, 128], strides = [1, 1]} : vector<8x384xf32> to vector<8x128xf32>
    %41 = arith.mulf %30, %40 : vector<8x128xf32>
    %42 = arith.addf %39, %41 : vector<8x128xf32>
    %43 = math.tanh %42 : vector<8x128xf32>
    %cst_20 = arith.constant 1.000000e+00 : f32
    %44 = vector.broadcast %cst_20 : f32 to vector<8x128xf32>
    %45 = arith.subf %44, %38 : vector<8x128xf32>
    %46 = arith.mulf %45, %43 : vector<8x128xf32>
    %47 = arith.mulf %38, %18 : vector<8x128xf32>
    %48 = arith.addf %46, %47 : vector<8x128xf32>
    %c0_21 = arith.constant 0 : index
    %c0_22 = arith.constant 0 : index
    %49 = vector.load %arg13[%c0_21, %c0_22] : memref<64x128xf32, #tpu.memory_space<vmem>>, vector<8x128xf32>
    tpu.vector_store %arg13[%c0_21, %c0_22], %48 {strides = array<i32>} : memref<64x128xf32, #tpu.memory_space<vmem>>, vector<8x128xf32>,
    %50 = vector.extract_strided_slice %13 {offsets = [8, 0], sizes = [8, 384], strides = [1, 1]} : vector<64x384xf32> to vector<8x384xf32>
    %51 = arith.truncf %48 : vector<8x128xf32> to vector<8x128xbf16>
    %cst_23 = arith.constant dense<0.000000e+00> : vector<8x384xf32>
    %52 = tpu.matmul %51, %14, %cst_23 {dimension_numbers = #tpu.dot_dimension_numbers<[1], [0], [0], [1], [0, 0, 1, 1], [], []>} : vector<8x128xbf16>, vector<128x384xbf16>, vector<8x384xf32> -> vector<8x384xf32>
    %53 = arith.addf %52, %17 : vector<8x384xf32>
    %54 = vector.extract_strided_slice %50 {offsets = [0, 0], sizes = [8, 128], strides = [1, 1]} : vector<8x384xf32> to vector<8x128xf32>
    %55 = vector.extract_strided_slice %53 {offsets = [0, 0], sizes = [8, 128], strides = [1, 1]} : vector<8x384xf32> to vector<8x128xf32>
    %56 = arith.addf %54, %55 : vector<8x128xf32>
    %57 = arith.negf %56 : vector<8x128xf32>
    %58 = math.exp %57 : vector<8x128xf32>
    %cst_24 = arith.constant 1.000000e+00 : f32
    %59 = vector.broadcast %cst_24 : f32 to vector<8x128xf32>
    %60 = arith.addf %59, %58 : vector<8x128xf32>
    %61 = arith.divf %59, %60 : vector<8x128xf32>
    %62 = vector.extract_strided_slice %50 {offsets = [0, 128], sizes = [8, 128], strides = [1, 1]} : vector<8x384xf32> to vector<8x128xf32>
    %63 = vector.extract_strided_slice %53 {offsets = [0, 128], sizes = [8, 128], strides = [1, 1]} : vector<8x384xf32> to vector<8x128xf32>
    %64 = arith.addf %62, %63 : vector<8x128xf32>
    %65 = arith.negf %64 : vector<8x128xf32>
    %66 = math.exp %65 : vector<8x128xf32>
    %cst_25 = arith.constant 1.000000e+00 : f32
    %67 = vector.broadcast %cst_25 : f32 to vector<8x128xf32>
    %68 = arith.addf %67, %66 : vector<8x128xf32>
    %69 = arith.divf %67, %68 : vector<8x128xf32>
    %70 = vector.extract_strided_slice %50 {offsets = [0, 256], sizes = [8, 128], strides = [1, 1]} : vector<8x384xf32> to vector<8x128xf32>
    %71 = vector.extract_strided_slice %53 {offsets = [0, 256], sizes = [8, 128], strides = [1, 1]} : vector<8x384xf32> to vector<8x128xf32>
    %72 = arith.mulf %61, %71 : vector<8x128xf32>
    %73 = arith.addf %70, %72 : vector<8x128xf32>
    %74 = math.tanh %73 : vector<8x128xf32>
    %cst_26 = arith.constant 1.000000e+00 : f32
    %75 = vector.broadcast %cst_26 : f32 to vector<8x128xf32>
    %76 = arith.subf %75, %69 : vector<8x128xf32>
    %77 = arith.mulf %76, %74 : vector<8x128xf32>
    %78 = arith.mulf %69, %48 : vector<8x128xf32>
    %79 = arith.addf %77, %78 : vector<8x128xf32>
    %c8 = arith.constant 8 : index
    %c0_27 = arith.constant 0 : index
    %80 = vector.load %arg13[%c8, %c0_27] : memref<64x128xf32, #tpu.memory_space<vmem>>, vector<8x128xf32>
    tpu.vector_store %arg13[%c8, %c0_27], %79 {strides = array<i32>} : memref<64x128xf32, #tpu.memory_space<vmem>>, vector<8x128xf32>,
    %81 = vector.extract_strided_slice %13 {offsets = [16, 0], sizes = [8, 384], strides = [1, 1]} : vector<64x384xf32> to vector<8x384xf32>
    %82 = arith.truncf %79 : vector<8x128xf32> to vector<8x128xbf16>
    %cst_28 = arith.constant dense<0.000000e+00> : vector<8x384xf32>
    %83 = tpu.matmul %82, %14, %cst_28 {dimension_numbers = #tpu.dot_dimension_numbers<[1], [0], [0], [1], [0, 0, 1, 1], [], []>} : vector<8x128xbf16>, vector<128x384xbf16>, vector<8x384xf32> -> vector<8x384xf32>
    %84 = arith.addf %83, %17 : vector<8x384xf32>
    %85 = vector.extract_strided_slice %81 {offsets = [0, 0], sizes = [8, 128], strides = [1, 1]} : vector<8x384xf32> to vector<8x128xf32>
    %86 = vector.extract_strided_slice %84 {offsets = [0, 0], sizes = [8, 128], strides = [1, 1]} : vector<8x384xf32> to vector<8x128xf32>
    %87 = arith.addf %85, %86 : vector<8x128xf32>
    %88 = arith.negf %87 : vector<8x128xf32>
    %89 = math.exp %88 : vector<8x128xf32>
    %cst_29 = arith.constant 1.000000e+00 : f32
    %90 = vector.broadcast %cst_29 : f32 to vector<8x128xf32>
    %91 = arith.addf %90, %89 : vector<8x128xf32>
    %92 = arith.divf %90, %91 : vector<8x128xf32>
    %93 = vector.extract_strided_slice %81 {offsets = [0, 128], sizes = [8, 128], strides = [1, 1]} : vector<8x384xf32> to vector<8x128xf32>
    %94 = vector.extract_strided_slice %84 {offsets = [0, 128], sizes = [8, 128], strides = [1, 1]} : vector<8x384xf32> to vector<8x128xf32>
    %95 = arith.addf %93, %94 : vector<8x128xf32>
    %96 = arith.negf %95 : vector<8x128xf32>
    %97 = math.exp %96 : vector<8x128xf32>
    %cst_30 = arith.constant 1.000000e+00 : f32
    %98 = vector.broadcast %cst_30 : f32 to vector<8x128xf32>
    %99 = arith.addf %98, %97 : vector<8x128xf32>
    %100 = arith.divf %98, %99 : vector<8x128xf32>
    %101 = vector.extract_strided_slice %81 {offsets = [0, 256], sizes = [8, 128], strides = [1, 1]} : vector<8x384xf32> to vector<8x128xf32>
    %102 = vector.extract_strided_slice %84 {offsets = [0, 256], sizes = [8, 128], strides = [1, 1]} : vector<8x384xf32> to vector<8x128xf32>
    %103 = arith.mulf %92, %102 : vector<8x128xf32>
    %104 = arith.addf %101, %103 : vector<8x128xf32>
    %105 = math.tanh %104 : vector<8x128xf32>
    %cst_31 = arith.constant 1.000000e+00 : f32
    %106 = vector.broadcast %cst_31 : f32 to vector<8x128xf32>
    %107 = arith.subf %106, %100 : vector<8x128xf32>
    %108 = arith.mulf %107, %105 : vector<8x128xf32>
    %109 = arith.mulf %100, %79 : vector<8x128xf32>
    %110 = arith.addf %108, %109 : vector<8x128xf32>
    %c16 = arith.constant 16 : index
    %c0_32 = arith.constant 0 : index
    %111 = vector.load %arg13[%c16, %c0_32] : memref<64x128xf32, #tpu.memory_space<vmem>>, vector<8x128xf32>
    tpu.vector_store %arg13[%c16, %c0_32], %110 {strides = array<i32>} : memref<64x128xf32, #tpu.memory_space<vmem>>, vector<8x128xf32>,
    %112 = vector.extract_strided_slice %13 {offsets = [24, 0], sizes = [8, 384], strides = [1, 1]} : vector<64x384xf32> to vector<8x384xf32>
    %113 = arith.truncf %110 : vector<8x128xf32> to vector<8x128xbf16>
    %cst_33 = arith.constant dense<0.000000e+00> : vector<8x384xf32>
    %114 = tpu.matmul %113, %14, %cst_33 {dimension_numbers = #tpu.dot_dimension_numbers<[1], [0], [0], [1], [0, 0, 1, 1], [], []>} : vector<8x128xbf16>, vector<128x384xbf16>, vector<8x384xf32> -> vector<8x384xf32>
    %115 = arith.addf %114, %17 : vector<8x384xf32>
    %116 = vector.extract_strided_slice %112 {offsets = [0, 0], sizes = [8, 128], strides = [1, 1]} : vector<8x384xf32> to vector<8x128xf32>
    %117 = vector.extract_strided_slice %115 {offsets = [0, 0], sizes = [8, 128], strides = [1, 1]} : vector<8x384xf32> to vector<8x128xf32>
    %118 = arith.addf %116, %117 : vector<8x128xf32>
    %119 = arith.negf %118 : vector<8x128xf32>
    %120 = math.exp %119 : vector<8x128xf32>
    %cst_34 = arith.constant 1.000000e+00 : f32
    %121 = vector.broadcast %cst_34 : f32 to vector<8x128xf32>
    %122 = arith.addf %121, %120 : vector<8x128xf32>
    %123 = arith.divf %121, %122 : vector<8x128xf32>
    %124 = vector.extract_strided_slice %112 {offsets = [0, 128], sizes = [8, 128], strides = [1, 1]} : vector<8x384xf32> to vector<8x128xf32>
    %125 = vector.extract_strided_slice %115 {offsets = [0, 128], sizes = [8, 128], strides = [1, 1]} : vector<8x384xf32> to vector<8x128xf32>
    %126 = arith.addf %124, %125 : vector<8x128xf32>
    %127 = arith.negf %126 : vector<8x128xf32>
    %128 = math.exp %127 : vector<8x128xf32>
    %cst_35 = arith.constant 1.000000e+00 : f32
    %129 = vector.broadcast %cst_35 : f32 to vector<8x128xf32>
    %130 = arith.addf %129, %128 : vector<8x128xf32>
    %131 = arith.divf %129, %130 : vector<8x128xf32>
    %132 = vector.extract_strided_slice %112 {offsets = [0, 256], sizes = [8, 128], strides = [1, 1]} : vector<8x384xf32> to vector<8x128xf32>
    %133 = vector.extract_strided_slice %115 {offsets = [0, 256], sizes = [8, 128], strides = [1, 1]} : vector<8x384xf32> to vector<8x128xf32>
    %134 = arith.mulf %123, %133 : vector<8x128xf32>
    %135 = arith.addf %132, %134 : vector<8x128xf32>
    %136 = math.tanh %135 : vector<8x128xf32>
    %cst_36 = arith.constant 1.000000e+00 : f32
    %137 = vector.broadcast %cst_36 : f32 to vector<8x128xf32>
    %138 = arith.subf %137, %131 : vector<8x128xf32>
    %139 = arith.mulf %138, %136 : vector<8x128xf32>
    %140 = arith.mulf %131, %110 : vector<8x128xf32>
    %141 = arith.addf %139, %140 : vector<8x128xf32>
    %c24 = arith.constant 24 : index
    %c0_37 = arith.constant 0 : index
    %142 = vector.load %arg13[%c24, %c0_37] : memref<64x128xf32, #tpu.memory_space<vmem>>, vector<8x128xf32>
    tpu.vector_store %arg13[%c24, %c0_37], %141 {strides = array<i32>} : memref<64x128xf32, #tpu.memory_space<vmem>>, vector<8x128xf32>,
    %143 = vector.extract_strided_slice %13 {offsets = [32, 0], sizes = [8, 384], strides = [1, 1]} : vector<64x384xf32> to vector<8x384xf32>
    %144 = arith.truncf %141 : vector<8x128xf32> to vector<8x128xbf16>
    %cst_38 = arith.constant dense<0.000000e+00> : vector<8x384xf32>
    %145 = tpu.matmul %144, %14, %cst_38 {dimension_numbers = #tpu.dot_dimension_numbers<[1], [0], [0], [1], [0, 0, 1, 1], [], []>} : vector<8x128xbf16>, vector<128x384xbf16>, vector<8x384xf32> -> vector<8x384xf32>
    %146 = arith.addf %145, %17 : vector<8x384xf32>
    %147 = vector.extract_strided_slice %143 {offsets = [0, 0], sizes = [8, 128], strides = [1, 1]} : vector<8x384xf32> to vector<8x128xf32>
    %148 = vector.extract_strided_slice %146 {offsets = [0, 0], sizes = [8, 128], strides = [1, 1]} : vector<8x384xf32> to vector<8x128xf32>
    %149 = arith.addf %147, %148 : vector<8x128xf32>
    %150 = arith.negf %149 : vector<8x128xf32>
    %151 = math.exp %150 : vector<8x128xf32>
    %cst_39 = arith.constant 1.000000e+00 : f32
    %152 = vector.broadcast %cst_39 : f32 to vector<8x128xf32>
    %153 = arith.addf %152, %151 : vector<8x128xf32>
    %154 = arith.divf %152, %153 : vector<8x128xf32>
    %155 = vector.extract_strided_slice %143 {offsets = [0, 128], sizes = [8, 128], strides = [1, 1]} : vector<8x384xf32> to vector<8x128xf32>
    %156 = vector.extract_strided_slice %146 {offsets = [0, 128], sizes = [8, 128], strides = [1, 1]} : vector<8x384xf32> to vector<8x128xf32>
    %157 = arith.addf %155, %156 : vector<8x128xf32>
    %158 = arith.negf %157 : vector<8x128xf32>
    %159 = math.exp %158 : vector<8x128xf32>
    %cst_40 = arith.constant 1.000000e+00 : f32
    %160 = vector.broadcast %cst_40 : f32 to vector<8x128xf32>
    %161 = arith.addf %160, %159 : vector<8x128xf32>
    %162 = arith.divf %160, %161 : vector<8x128xf32>
    %163 = vector.extract_strided_slice %143 {offsets = [0, 256], sizes = [8, 128], strides = [1, 1]} : vector<8x384xf32> to vector<8x128xf32>
    %164 = vector.extract_strided_slice %146 {offsets = [0, 256], sizes = [8, 128], strides = [1, 1]} : vector<8x384xf32> to vector<8x128xf32>
    %165 = arith.mulf %154, %164 : vector<8x128xf32>
    %166 = arith.addf %163, %165 : vector<8x128xf32>
    %167 = math.tanh %166 : vector<8x128xf32>
    %cst_41 = arith.constant 1.000000e+00 : f32
    %168 = vector.broadcast %cst_41 : f32 to vector<8x128xf32>
    %169 = arith.subf %168, %162 : vector<8x128xf32>
    %170 = arith.mulf %169, %167 : vector<8x128xf32>
    %171 = arith.mulf %162, %141 : vector<8x128xf32>
    %172 = arith.addf %170, %171 : vector<8x128xf32>
    %c32 = arith.constant 32 : index
    %c0_42 = arith.constant 0 : index
    %173 = vector.load %arg13[%c32, %c0_42] : memref<64x128xf32, #tpu.memory_space<vmem>>, vector<8x128xf32>
    tpu.vector_store %arg13[%c32, %c0_42], %172 {strides = array<i32>} : memref<64x128xf32, #tpu.memory_space<vmem>>, vector<8x128xf32>,
    %174 = vector.extract_strided_slice %13 {offsets = [40, 0], sizes = [8, 384], strides = [1, 1]} : vector<64x384xf32> to vector<8x384xf32>
    %175 = arith.truncf %172 : vector<8x128xf32> to vector<8x128xbf16>
    %cst_43 = arith.constant dense<0.000000e+00> : vector<8x384xf32>
    %176 = tpu.matmul %175, %14, %cst_43 {dimension_numbers = #tpu.dot_dimension_numbers<[1], [0], [0], [1], [0, 0, 1, 1], [], []>} : vector<8x128xbf16>, vector<128x384xbf16>, vector<8x384xf32> -> vector<8x384xf32>
    %177 = arith.addf %176, %17 : vector<8x384xf32>
    %178 = vector.extract_strided_slice %174 {offsets = [0, 0], sizes = [8, 128], strides = [1, 1]} : vector<8x384xf32> to vector<8x128xf32>
    %179 = vector.extract_strided_slice %177 {offsets = [0, 0], sizes = [8, 128], strides = [1, 1]} : vector<8x384xf32> to vector<8x128xf32>
    %180 = arith.addf %178, %179 : vector<8x128xf32>
    %181 = arith.negf %180 : vector<8x128xf32>
    %182 = math.exp %181 : vector<8x128xf32>
    %cst_44 = arith.constant 1.000000e+00 : f32
    %183 = vector.broadcast %cst_44 : f32 to vector<8x128xf32>
    %184 = arith.addf %183, %182 : vector<8x128xf32>
    %185 = arith.divf %183, %184 : vector<8x128xf32>
    %186 = vector.extract_strided_slice %174 {offsets = [0, 128], sizes = [8, 128], strides = [1, 1]} : vector<8x384xf32> to vector<8x128xf32>
    %187 = vector.extract_strided_slice %177 {offsets = [0, 128], sizes = [8, 128], strides = [1, 1]} : vector<8x384xf32> to vector<8x128xf32>
    %188 = arith.addf %186, %187 : vector<8x128xf32>
    %189 = arith.negf %188 : vector<8x128xf32>
    %190 = math.exp %189 : vector<8x128xf32>
    %cst_45 = arith.constant 1.000000e+00 : f32
    %191 = vector.broadcast %cst_45 : f32 to vector<8x128xf32>
    %192 = arith.addf %191, %190 : vector<8x128xf32>
    %193 = arith.divf %191, %192 : vector<8x128xf32>
    %194 = vector.extract_strided_slice %174 {offsets = [0, 256], sizes = [8, 128], strides = [1, 1]} : vector<8x384xf32> to vector<8x128xf32>
    %195 = vector.extract_strided_slice %177 {offsets = [0, 256], sizes = [8, 128], strides = [1, 1]} : vector<8x384xf32> to vector<8x128xf32>
    %196 = arith.mulf %185, %195 : vector<8x128xf32>
    %197 = arith.addf %194, %196 : vector<8x128xf32>
    %198 = math.tanh %197 : vector<8x128xf32>
    %cst_46 = arith.constant 1.000000e+00 : f32
    %199 = vector.broadcast %cst_46 : f32 to vector<8x128xf32>
    %200 = arith.subf %199, %193 : vector<8x128xf32>
    %201 = arith.mulf %200, %198 : vector<8x128xf32>
    %202 = arith.mulf %193, %172 : vector<8x128xf32>
    %203 = arith.addf %201, %202 : vector<8x128xf32>
    %c40 = arith.constant 40 : index
    %c0_47 = arith.constant 0 : index
    %204 = vector.load %arg13[%c40, %c0_47] : memref<64x128xf32, #tpu.memory_space<vmem>>, vector<8x128xf32>
    tpu.vector_store %arg13[%c40, %c0_47], %203 {strides = array<i32>} : memref<64x128xf32, #tpu.memory_space<vmem>>, vector<8x128xf32>,
    %205 = vector.extract_strided_slice %13 {offsets = [48, 0], sizes = [8, 384], strides = [1, 1]} : vector<64x384xf32> to vector<8x384xf32>
    %206 = arith.truncf %203 : vector<8x128xf32> to vector<8x128xbf16>
    %cst_48 = arith.constant dense<0.000000e+00> : vector<8x384xf32>
    %207 = tpu.matmul %206, %14, %cst_48 {dimension_numbers = #tpu.dot_dimension_numbers<[1], [0], [0], [1], [0, 0, 1, 1], [], []>} : vector<8x128xbf16>, vector<128x384xbf16>, vector<8x384xf32> -> vector<8x384xf32>
    %208 = arith.addf %207, %17 : vector<8x384xf32>
    %209 = vector.extract_strided_slice %205 {offsets = [0, 0], sizes = [8, 128], strides = [1, 1]} : vector<8x384xf32> to vector<8x128xf32>
    %210 = vector.extract_strided_slice %208 {offsets = [0, 0], sizes = [8, 128], strides = [1, 1]} : vector<8x384xf32> to vector<8x128xf32>
    %211 = arith.addf %209, %210 : vector<8x128xf32>
    %212 = arith.negf %211 : vector<8x128xf32>
    %213 = math.exp %212 : vector<8x128xf32>
    %cst_49 = arith.constant 1.000000e+00 : f32
    %214 = vector.broadcast %cst_49 : f32 to vector<8x128xf32>
    %215 = arith.addf %214, %213 : vector<8x128xf32>
    %216 = arith.divf %214, %215 : vector<8x128xf32>
    %217 = vector.extract_strided_slice %205 {offsets = [0, 128], sizes = [8, 128], strides = [1, 1]} : vector<8x384xf32> to vector<8x128xf32>
    %218 = vector.extract_strided_slice %208 {offsets = [0, 128], sizes = [8, 128], strides = [1, 1]} : vector<8x384xf32> to vector<8x128xf32>
    %219 = arith.addf %217, %218 : vector<8x128xf32>
    %220 = arith.negf %219 : vector<8x128xf32>
    %221 = math.exp %220 : vector<8x128xf32>
    %cst_50 = arith.constant 1.000000e+00 : f32
    %222 = vector.broadcast %cst_50 : f32 to vector<8x128xf32>
    %223 = arith.addf %222, %221 : vector<8x128xf32>
    %224 = arith.divf %222, %223 : vector<8x128xf32>
    %225 = vector.extract_strided_slice %205 {offsets = [0, 256], sizes = [8, 128], strides = [1, 1]} : vector<8x384xf32> to vector<8x128xf32>
    %226 = vector.extract_strided_slice %208 {offsets = [0, 256], sizes = [8, 128], strides = [1, 1]} : vector<8x384xf32> to vector<8x128xf32>
    %227 = arith.mulf %216, %226 : vector<8x128xf32>
    %228 = arith.addf %225, %227 : vector<8x128xf32>
    %229 = math.tanh %228 : vector<8x128xf32>
    %cst_51 = arith.constant 1.000000e+00 : f32
    %230 = vector.broadcast %cst_51 : f32 to vector<8x128xf32>
    %231 = arith.subf %230, %224 : vector<8x128xf32>
    %232 = arith.mulf %231, %229 : vector<8x128xf32>
    %233 = arith.mulf %224, %203 : vector<8x128xf32>
    %234 = arith.addf %232, %233 : vector<8x128xf32>
    %c48 = arith.constant 48 : index
    %c0_52 = arith.constant 0 : index
    %235 = vector.load %arg13[%c48, %c0_52] : memref<64x128xf32, #tpu.memory_space<vmem>>, vector<8x128xf32>
    tpu.vector_store %arg13[%c48, %c0_52], %234 {strides = array<i32>} : memref<64x128xf32, #tpu.memory_space<vmem>>, vector<8x128xf32>,
    %236 = vector.extract_strided_slice %13 {offsets = [56, 0], sizes = [8, 384], strides = [1, 1]} : vector<64x384xf32> to vector<8x384xf32>
    %237 = arith.truncf %234 : vector<8x128xf32> to vector<8x128xbf16>
    %cst_53 = arith.constant dense<0.000000e+00> : vector<8x384xf32>
    %238 = tpu.matmul %237, %14, %cst_53 {dimension_numbers = #tpu.dot_dimension_numbers<[1], [0], [0], [1], [0, 0, 1, 1], [], []>} : vector<8x128xbf16>, vector<128x384xbf16>, vector<8x384xf32> -> vector<8x384xf32>
    %239 = arith.addf %238, %17 : vector<8x384xf32>
    %240 = vector.extract_strided_slice %236 {offsets = [0, 0], sizes = [8, 128], strides = [1, 1]} : vector<8x384xf32> to vector<8x128xf32>
    %241 = vector.extract_strided_slice %239 {offsets = [0, 0], sizes = [8, 128], strides = [1, 1]} : vector<8x384xf32> to vector<8x128xf32>
    %242 = arith.addf %240, %241 : vector<8x128xf32>
    %243 = arith.negf %242 : vector<8x128xf32>
    %244 = math.exp %243 : vector<8x128xf32>
    %cst_54 = arith.constant 1.000000e+00 : f32
    %245 = vector.broadcast %cst_54 : f32 to vector<8x128xf32>
    %246 = arith.addf %245, %244 : vector<8x128xf32>
    %247 = arith.divf %245, %246 : vector<8x128xf32>
    %248 = vector.extract_strided_slice %236 {offsets = [0, 128], sizes = [8, 128], strides = [1, 1]} : vector<8x384xf32> to vector<8x128xf32>
    %249 = vector.extract_strided_slice %239 {offsets = [0, 128], sizes = [8, 128], strides = [1, 1]} : vector<8x384xf32> to vector<8x128xf32>
    %250 = arith.addf %248, %249 : vector<8x128xf32>
    %251 = arith.negf %250 : vector<8x128xf32>
    %252 = math.exp %251 : vector<8x128xf32>
    %cst_55 = arith.constant 1.000000e+00 : f32
    %253 = vector.broadcast %cst_55 : f32 to vector<8x128xf32>
    %254 = arith.addf %253, %252 : vector<8x128xf32>
    %255 = arith.divf %253, %254 : vector<8x128xf32>
    %256 = vector.extract_strided_slice %236 {offsets = [0, 256], sizes = [8, 128], strides = [1, 1]} : vector<8x384xf32> to vector<8x128xf32>
    %257 = vector.extract_strided_slice %239 {offsets = [0, 256], sizes = [8, 128], strides = [1, 1]} : vector<8x384xf32> to vector<8x128xf32>
    %258 = arith.mulf %247, %257 : vector<8x128xf32>
    %259 = arith.addf %256, %258 : vector<8x128xf32>
    %260 = math.tanh %259 : vector<8x128xf32>
    %cst_56 = arith.constant 1.000000e+00 : f32
    %261 = vector.broadcast %cst_56 : f32 to vector<8x128xf32>
    %262 = arith.subf %261, %255 : vector<8x128xf32>
    %263 = arith.mulf %262, %260 : vector<8x128xf32>
    %264 = arith.mulf %255, %234 : vector<8x128xf32>
    %265 = arith.addf %263, %264 : vector<8x128xf32>
    %c56 = arith.constant 56 : index
    %c0_57 = arith.constant 0 : index
    %266 = vector.load %arg13[%c56, %c0_57] : memref<64x128xf32, #tpu.memory_space<vmem>>, vector<8x128xf32>
    tpu.vector_store %arg13[%c56, %c0_57], %265 {strides = array<i32>} : memref<64x128xf32, #tpu.memory_space<vmem>>, vector<8x128xf32>,
    %c0_58 = arith.constant 0 : index
    %c0_59 = arith.constant 0 : index
    %267 = vector.load %arg12[%c0_58, %c0_59] : memref<8x128xf32, #tpu.memory_space<vmem>>, vector<8x128xf32>
    tpu.vector_store %arg12[%c0_58, %c0_59], %265 {strides = array<i32>} : memref<8x128xf32, #tpu.memory_space<vmem>>, vector<8x128xf32>,
    %c0_60 = arith.constant 0 : index
    %c0_61 = arith.constant 0 : index
    %268 = vector.load %arg13[%c0_60, %c0_61] : memref<64x128xf32, #tpu.memory_space<vmem>>, vector<64x128xf32>
    %269 = arith.truncf %268 : vector<64x128xf32> to vector<64x128xbf16>
    %c0_62 = arith.constant 0 : index
    %c0_63 = arith.constant 0 : index
    %270 = vector.load %arg9[%c0_62, %c0_63] : memref<128x128xbf16, #tpu.memory_space<vmem>>, vector<128x128xbf16>
    %cst_64 = arith.constant dense<0.000000e+00> : vector<64x128xf32>
    %271 = tpu.matmul %269, %270, %cst_64 {dimension_numbers = #tpu.dot_dimension_numbers<[1], [0], [0], [1], [0, 0, 1, 1], [], []>} : vector<64x128xbf16>, vector<128x128xbf16>, vector<64x128xf32> -> vector<64x128xf32>
    %c0_65 = arith.constant 0 : index
    %c0_66 = arith.constant 0 : index
    %272 = vector.load %arg10[%c0_65, %c0_66] : memref<1x128xf32, #tpu.memory_space<vmem>>, vector<1x128xf32>
    %273 = vector.broadcast %272 : vector<1x128xf32> to vector<64x128xf32>
    %274 = arith.addf %271, %273 : vector<64x128xf32>
    %c0_67 = arith.constant 0 : index
    %c0_68 = arith.constant 0 : index
    %275 = vector.load %arg11[%c0_67, %c0_68] : memref<64x128xf32, #tpu.memory_space<vmem>>, vector<64x128xf32>
    tpu.vector_store %arg11[%c0_67, %c0_68], %274 {strides = array<i32>} : memref<64x128xf32, #tpu.memory_space<vmem>>, vector<64x128xf32>,
    return
  }
  func.func @transform_0(%arg0: i32) -> (i32, i32) {
    %c0_i32 = arith.constant 0 : i32
    %c0_i32_0 = arith.constant 0 : i32
    %c0_i32_1 = arith.constant 0 : i32
    return %c0_i32, %c0_i32_0 : i32, i32
  }
  func.func @transform_1(%arg0: i32) -> (i32, i32) {
    %c0_i32 = arith.constant 0 : i32
    %c0_i32_0 = arith.constant 0 : i32
    %c0_i32_1 = arith.constant 0 : i32
    return %c0_i32, %c0_i32_0 : i32, i32
  }
  func.func @transform_2(%arg0: i32) -> (i32, i32) {
    %c0_i32 = arith.constant 0 : i32
    %c0_i32_0 = arith.constant 0 : i32
    %c0_i32_1 = arith.constant 0 : i32
    return %c0_i32, %c0_i32_0 : i32, i32
  }
  func.func @transform_3(%arg0: i32) -> (i32, i32) {
    %c0_i32 = arith.constant 0 : i32
    %c0_i32_0 = arith.constant 0 : i32
    %c0_i32_1 = arith.constant 0 : i32
    return %c0_i32, %c0_i32_0 : i32, i32
  }
  func.func @transform_4(%arg0: i32) -> (i32, i32) {
    %c0_i32 = arith.constant 0 : i32
    %c0_i32_0 = arith.constant 0 : i32
    %c0_i32_1 = arith.constant 0 : i32
    return %c0_i32, %c0_i32_0 : i32, i32
  }
  func.func @transform_5(%arg0: i32) -> (i32, i32) {
    %c0_i32 = arith.constant 0 : i32
    %c0_i32_0 = arith.constant 0 : i32
    %c0_i32_1 = arith.constant 0 : i32
    return %c0_i32, %c0_i32_0 : i32, i32
  }
  func.func @transform_6(%arg0: i32) -> (i32, i32) {
    %c0_i32 = arith.constant 0 : i32
    %c0_i32_0 = arith.constant 0 : i32
    %c0_i32_1 = arith.constant 0 : i32
    return %c0_i32, %c0_i32_0 : i32, i32
  }
  func.func @transform_7(%arg0: i32) -> (i32, i32) {
    %c0_i32 = arith.constant 0 : i32
    %c0_i32_0 = arith.constant 0 : i32
    %c0_i32_1 = arith.constant 0 : i32
    return %c0_i32, %c0_i32_0 : i32, i32
  }
  func.func @transform_8(%arg0: i32) -> (i32, i32) {
    %c0_i32 = arith.constant 0 : i32
    %c0_i32_0 = arith.constant 0 : i32
    %c0_i32_1 = arith.constant 0 : i32
    return %c0_i32, %c0_i32_0 : i32, i32
  }
  func.func @transform_9(%arg0: i32) -> (i32, i32) {
    %c0_i32 = arith.constant 0 : i32
    %c0_i32_0 = arith.constant 0 : i32
    %c0_i32_1 = arith.constant 0 : i32
    return %c0_i32, %c0_i32_0 : i32, i32
  }
  func.func @transform_10(%arg0: i32) -> (i32, i32) {
    %c0_i32 = arith.constant 0 : i32
    %c0_i32_0 = arith.constant 0 : i32
    %c0_i32_1 = arith.constant 0 : i32
    return %c0_i32, %c0_i32_0 : i32, i32
  }
  func.func @transform_11(%arg0: i32) -> (i32, i32) {
    %c0_i32 = arith.constant 0 : i32
    %c0_i32_0 = arith.constant 0 : i32
    %c0_i32_1 = arith.constant 0 : i32
    return %c0_i32, %c0_i32_0 : i32, i32
  }
}

</mosaic_0001>

<llo_original>
// kernel: tpu_custom_call.1
$region0: #{tpu_custom_call.1}
  #allocation0 [shape = 'u32[]', space=smem, size = 0x4, offset = 0x4, fixed_abs, tag = 'smem constant byte address 0x4 - core index']
  #allocation1 [shape = 'u32[144,128]{1,0:T(1,128)}', space=vmem, size = 0x12000, scoped, tag = 'internal scratch']
  #allocation2 [shape = 'f32[64,128]{1,0:T(8,128)}', space=vmem, size = 0x8000, scoped, tag = 'scratch operand']
  %s0 = inlined_call_operand.vmem [shape: bf16[64,16], index: 0, kind: input, shape index: {}]
  %s1 = inlined_call_operand.vmem [shape: f32[8,128], index: 1, kind: input, shape index: {}]
  %s2 = inlined_call_operand.vmem [shape: bf16[16,128], index: 2, kind: input, shape index: {}]
  %s3 = inlined_call_operand.vmem [shape: f32[1,128], index: 3, kind: input, shape index: {}]
  %s4 = inlined_call_operand.hbm [shape: bf16[128,384], index: 4, kind: input, shape index: {}]
  %s5 = inlined_call_operand.vmem [shape: f32[1,384], index: 5, kind: input, shape index: {}]
  %s6 = inlined_call_operand.hbm [shape: bf16[128,384], index: 6, kind: input, shape index: {}]
  %s7 = inlined_call_operand.vmem [shape: f32[1,384], index: 7, kind: input, shape index: {}]
  %s8 = inlined_call_operand.hbm [shape: bf16[128,128], index: 8, kind: input, shape index: {}]
  %s9 = inlined_call_operand.vmem [shape: f32[1,128], index: 9, kind: input, shape index: {}]
  %s10 = inlined_call_operand.hbm [shape: f32[64,128], index: 10, kind: output, shape index: {0}]
  %s11 = inlined_call_operand.hbm [shape: f32[8,128], index: 11, kind: output, shape index: {1}]
  %12 = xla_tuple %s10, %s11
  %s13 = sld [smem:[#allocation0]]
  $region70: #{tpu_custom_call.1} parent=0
    _
  %s15 = ssub.s32 1, %s13
  %s16 = scalar_select 0, %s15, %s13
  $region1: #{tpu_custom_call.1} parent=0
    #allocation3 [shape = 'u8[98304]{0}', space=vmem, size = 0x18000, scoped, tag = 'input window, operand 4, single buffered']
    #allocation4 [shape = 's32[1]{0}', space=sflag, size = 0x4, scoped, tag = 'scoped memory for tpu_custom_call.1']
    #allocation5 [shape = 's32[1]{0}', space=sflag, size = 0x4, scoped, tag = 'scoped memory for tpu_custom_call.1']
    #allocation6 [shape = 'u8[98304]{0}', space=vmem, size = 0x18000, scoped, tag = 'input window, operand 6, single buffered']
    #allocation7 [shape = 's32[1]{0}', space=sflag, size = 0x4, scoped, tag = 'scoped memory for tpu_custom_call.1']
    #allocation8 [shape = 'u8[32768]{0}', space=vmem, size = 0x8000, scoped, tag = 'input window, operand 8, single buffered']
    #allocation9 [shape = 'u8[32768]{0}', space=vmem, size = 0x8000, scoped, tag = 'output window, operand 0, single buffered']
    #allocation10 [shape = 'u8[4096]{0}', space=vmem, size = 0x1000, scoped, tag = 'output window, operand 1, single buffered']
    #allocation11 [shape = 's32[1]{0}', space=sflag, size = 0x4, scoped, tag = 'scoped memory for tpu_custom_call.1']
    %17 = vsyncpa [#allocation4], 0
    %18 = vsyncpa [#allocation7], 0
    %19 = vsyncpa [#allocation5], 0
    %20 = vsyncpa [#allocation11], 0
    // Predicated region
    $region2: #{tpu_custom_call.1} parent=1 // pred_check
      _
    $region3: #{tpu_custom_call.1} parent=1 // pred_check_branch
      %22 = sbr.rel (0) target = $region5
    $region4: #{tpu_custom_call.1} parent=1 // pred_region
      _
    $region5: #{tpu_custom_call.1} parent=1 // pred_fallthru
      _
    // Predicated region
    $region6: #{tpu_custom_call.1} parent=1 // pred_check
      _
    $region7: #{tpu_custom_call.1} parent=1 // pred_check_branch
      %24 = sbr.rel (0) target = $region9
    $region8: #{tpu_custom_call.1} parent=1 // pred_region
      _
    $region9: #{tpu_custom_call.1} parent=1 // pred_fallthru
      _
    // Predicated region
    $region10: #{tpu_custom_call.1} parent=1 // pred_check
      _
    $region11: #{tpu_custom_call.1} parent=1 // pred_check_branch
      %26 = sbr.rel (0) target = $region13
    $region12: #{tpu_custom_call.1} parent=1 // pred_region
      _
    $region13: #{tpu_custom_call.1} parent=1 // pred_fallthru
      _
    // Predicated region
    $region14: #{tpu_custom_call.1} parent=1 // pred_check
      _
    $region15: #{tpu_custom_call.1} parent=1 // pred_check_branch
      %28 = sbr.rel (0) target = $region17
    $region16: #{tpu_custom_call.1} parent=1 // pred_region
      _
    $region17: #{tpu_custom_call.1} parent=1 // pred_fallthru
      _
    // Predicated region
    $region18: #{tpu_custom_call.1} parent=1 // pred_check
      _
    $region19: #{tpu_custom_call.1} parent=1 // pred_check_branch
      %30 = sbr.rel (0) target = $region21
    $region20: #{tpu_custom_call.1} parent=1 // pred_region
      %s32 = ssub.s32 3072, 3072
      %33 = vsyncadd [#allocation4], %s32
      %s34 = sshll.u32 [#allocation3], 4
      %s35 = int_to_ptr.vmem [resolvable:$true] %s34
      %40 = dma.hbm_to_vmem [thread:$0]  %s4, 3072, %s35, [#allocation4], 192, 192, 12
    $region21: #{tpu_custom_call.1} parent=1 // pred_fallthru
      _
    // Predicated region
    $region22: #{tpu_custom_call.1} parent=1 // pred_check
      _
    $region23: #{tpu_custom_call.1} parent=1 // pred_check_branch
      %42 = sbr.rel (0) target = $region25
    $region24: #{tpu_custom_call.1} parent=1 // pred_region
      _
    $region25: #{tpu_custom_call.1} parent=1 // pred_fallthru
      _
    // Predicated region
    $region26: #{tpu_custom_call.1} parent=1 // pred_check
      _
    $region27: #{tpu_custom_call.1} parent=1 // pred_check_branch
      %44 = sbr.rel (0) target = $region29
    $region28: #{tpu_custom_call.1} parent=1 // pred_region
      %s46 = ssub.s32 3072, 3072
      %47 = vsyncadd [#allocation7], %s46
      %s48 = sshll.u32 [#allocation6], 4
      %s49 = int_to_ptr.vmem [resolvable:$true] %s48
      %54 = dma.hbm_to_vmem [thread:$0]  %s6, 3072, %s49, [#allocation7], 192, 192, 12
    $region29: #{tpu_custom_call.1} parent=1 // pred_fallthru
      _
    // Predicated region
    $region30: #{tpu_custom_call.1} parent=1 // pred_check
      _
    $region31: #{tpu_custom_call.1} parent=1 // pred_check_branch
      %56 = sbr.rel (0) target = $region33
    $region32: #{tpu_custom_call.1} parent=1 // pred_region
      _
    $region33: #{tpu_custom_call.1} parent=1 // pred_fallthru
      _
    // Predicated region
    $region34: #{tpu_custom_call.1} parent=1 // pred_check
      _
    $region35: #{tpu_custom_call.1} parent=1 // pred_check_branch
      %58 = sbr.rel (0) target = $region37
    $region36: #{tpu_custom_call.1} parent=1 // pred_region
      %s60 = ssub.s32 1024, 1024
      %61 = vsyncadd [#allocation7], %s60
      %s62 = sshll.u32 [#allocation8], 4
      %s63 = int_to_ptr.vmem [resolvable:$true] %s62
      %68 = dma.hbm_to_vmem [thread:$0]  %s8, 1024, %s63, [#allocation7], 64, 64, 4
    $region37: #{tpu_custom_call.1} parent=1 // pred_fallthru
      _
    // Predicated region
    $region38: #{tpu_custom_call.1} parent=1 // pred_check
      _
    $region39: #{tpu_custom_call.1} parent=1 // pred_check_branch
      %70 = sbr.rel (0) target = $region41
    $region40: #{tpu_custom_call.1} parent=1 // pred_region
      _
    $region41: #{tpu_custom_call.1} parent=1 // pred_fallthru
      _
    // Predicated region
    $region42: #{tpu_custom_call.1} parent=1 // pred_check
      _
    $region43: #{tpu_custom_call.1} parent=1 // pred_check_branch
      %72 = sbr.rel (0) target = $region45
    $region44: #{tpu_custom_call.1} parent=1 // pred_region
      %73 = dma.done [#allocation4], 3072
    $region45: #{tpu_custom_call.1} parent=1 // pred_fallthru
      _
    // Predicated region
    $region46: #{tpu_custom_call.1} parent=1 // pred_check
      _
    $region47: #{tpu_custom_call.1} parent=1 // pred_check_branch
      %75 = sbr.rel (0) target = $region49
    $region48: #{tpu_custom_call.1} parent=1 // pred_region
      %76 = dma.done [#allocation7], 3072
    $region49: #{tpu_custom_call.1} parent=1 // pred_fallthru
      _
    // Predicated region
    $region50: #{tpu_custom_call.1} parent=1 // pred_check
      _
    $region51: #{tpu_custom_call.1} parent=1 // pred_check_branch
      %78 = sbr.rel (0) target = $region53
    $region52: #{tpu_custom_call.1} parent=1 // pred_region
      %79 = dma.done [#allocation7], 1024
    $region53: #{tpu_custom_call.1} parent=1 // pred_fallthru
      _
    %v81 = vld [vmem:[%s0] sm:$0xf]
    %v82 = vld [vmem:[%s0 + $0x4] sm:$0xf]
    %v83 = vld [vmem:[%s0 + $0x8] sm:$0xf]
    %v84 = vld [vmem:[%s0 + $0xc] sm:$0xf]
    %v85 = vld [vmem:[%s0 + $0x10] sm:$0xf]
    %v86 = vld [vmem:[%s0 + $0x14] sm:$0xf]
    %v87 = vld [vmem:[%s0 + $0x18] sm:$0xf]
    %v88 = vld [vmem:[%s0 + $0x1c] sm:$0xf]
    %v89 = vld [vmem:[%s2] sm:$0xf]
    %v90 = vld [vmem:[%s2 + $0x4] sm:$0xf]
    %v91 = vld [vmem:[%s3] sm:$0x1]
    %v93 = vlaneseq
    %v94 = vshrl.u32 %v93, 7
    %v95 = vsub.s32 0, %v94
    %v96 = vrot.slane %v91, %v95
    %v106 = vunpack.c.l.b16 %v81
    %v107 = vunpack.c.l.b16 %v82
    %v108 = vunpack.c.l.b16 %v83
    %v109 = vunpack.c.l.b16 %v84
    %v110 = vunpack.c.l.b16 %v85
    %v111 = vunpack.c.l.b16 %v86
    %v112 = vunpack.c.l.b16 %v87
    %v113 = vunpack.c.l.b16 %v88
    %v114 = vpack.c.b16 %v107, %v106
    %v115 = vpack.c.b16 %v109, %v108
    %v116 = vpack.c.b16 %v111, %v110
    %v117 = vpack.c.b16 %v113, %v112
    %v120 = vunpack.c.l.b16 %v89
    %v121 = vunpack.c.l.b16 %v90
    %v122 = vpack.c.b16 %v121, %v120
    %vm124 = vcmask 130048
    %v126 = vsel %vm124, %v114, 0
    %v129 = vsel %vm124, %v115, 0
    %v132 = vsel %vm124, %v116, 0
    %v135 = vsel %vm124, %v117, 0
    %137 = vmatprep.subr.bf16.mxu0 0
    %138 = vmatpush1.bf16.msra.mxu0 0
    %139 = vmatprep.subr.bf16.mxu0 0
    %140 = vmatpush1.bf16.msra.mxu0 0
    %141 = vmatprep.subr.bf16.mxu0 0
    %142 = vmatpush1.bf16.msra.mxu0 0
    %143 = vmatprep.subr.bf16.mxu0 0
    %144 = vmatpush1.bf16.msra.mxu0 0
    %145 = vmatprep.subr.bf16.mxu0 0
    %146 = vmatpush1.bf16.msra.mxu0 0
    %147 = vmatprep.subr.bf16.mxu0 0
    %148 = vmatpush1.bf16.msra.mxu0 0
    %149 = vmatprep.subr.bf16.mxu0 0
    %150 = vmatpush1.bf16.msra.mxu0 0
    %151 = vmatprep.subr.bf16.mxu0 0
    %152 = vmatpush1.bf16.msra.mxu0 %v122
    %153 = vmatprep.subr.bf16.mxu0 0
    %154 = vmatpush2.bf16.msra.mxu0 0
    %155 = vmatprep.subr.bf16.mxu0 0
    %156 = vmatpush2.bf16.msra.mxu0 0
    %157 = vmatprep.subr.bf16.mxu0 0
    %158 = vmatpush2.bf16.msra.mxu0 0
    %159 = vmatprep.subr.bf16.mxu0 0
    %160 = vmatpush2.bf16.msra.mxu0 0
    %161 = vmatprep.subr.bf16.mxu0 0
    %162 = vmatpush2.bf16.msra.mxu0 0
    %163 = vmatprep.subr.bf16.mxu0 0
    %164 = vmatpush2.bf16.msra.mxu0 0
    %165 = vmatprep.subr.bf16.mxu0 0
    %166 = vmatpush2.bf16.msra.mxu0 0
    %167 = vmatprep.subr.bf16.mxu0 0
    %168 = vmatpush2.bf16.msra.mxu0 0
    %169 = vmatprep.mubr.bf16.mxu0 0
    %170 = vmatmul.mubr.bf16.gmra.mxu0 %v126
    %v171 = vpop.f32.mrf.mxu0
    %v172 = vadd.f32 %v96, %v171
    %v173 = vpop.f32.mrf.mxu0
    %v174 = vpop.f32.mrf.mxu0
    %v175 = vadd.f32 %v96, %v174
    %v176 = vpop.f32.mrf.mxu0
    %177 = vmatprep.mubr.bf16.mxu0 0
    %178 = vmatmul.mubr.bf16.gmra.mxu0 %v129
    %v179 = vpop.f32.mrf.mxu0
    %v180 = vadd.f32 %v96, %v179
    %v181 = vpop.f32.mrf.mxu0
    %v182 = vpop.f32.mrf.mxu0
    %v183 = vadd.f32 %v96, %v182
    %v184 = vpop.f32.mrf.mxu0
    %185 = vmatprep.mubr.bf16.mxu0 0
    %186 = vmatmul.mubr.bf16.gmra.mxu0 %v132
    %v187 = vpop.f32.mrf.mxu0
    %v188 = vadd.f32 %v96, %v187
    %v189 = vpop.f32.mrf.mxu0
    %v190 = vpop.f32.mrf.mxu0
    %v191 = vadd.f32 %v96, %v190
    %v192 = vpop.f32.mrf.mxu0
    %193 = vmatprep.mubr.bf16.mxu0 0
    %194 = vmatmul.mubr.bf16.gmra.mxu0 %v135
    %v195 = vpop.f32.mrf.mxu0
    %v196 = vadd.f32 %v96, %v195
    %v197 = vpop.f32.mrf.mxu0
    %v198 = vpop.f32.mrf.mxu0
    %v199 = vadd.f32 %v96, %v198
    %v200 = vpop.f32.mrf.mxu0
    %201 = vdwg.mxu0
    %v202 = vmax.f32 %v172, 0.0
    %v203 = vmax.f32 %v175, 0.0
    %v204 = vmax.f32 %v180, 0.0
    %v205 = vmax.f32 %v183, 0.0
    %v206 = vmax.f32 %v188, 0.0
    %v207 = vmax.f32 %v191, 0.0
    %v208 = vmax.f32 %v196, 0.0
    %v209 = vmax.f32 %v199, 0.0
    %v210 = vpack.c.bf16 %v203, %v202
    %v211 = vpack.c.bf16 %v205, %v204
    %v212 = vpack.c.bf16 %v207, %v206
    %v213 = vpack.c.bf16 %v209, %v208
    %v214 = vld [vmem:[#allocation3] sm:$0xff]
    %v215 = vld [vmem:[#allocation3 + $0x8] sm:$0xf]
    %v216 = vld [vmem:[#allocation3 + $0xc] sm:$0xff]
    %v217 = vld [vmem:[#allocation3 + $0x14] sm:$0xf]
    %v218 = vld [vmem:[#allocation3 + $0x18] sm:$0xff]
    %v219 = vld [vmem:[#allocation3 + $0x20] sm:$0xf]
    %v220 = vld [vmem:[#allocation3 + $0x24] sm:$0xff]
    %v221 = vld [vmem:[#allocation3 + $0x2c] sm:$0xf]
    %v222 = vld [vmem:[#allocation3 + $0x30] sm:$0xff]
    %v223 = vld [vmem:[#allocation3 + $0x38] sm:$0xf]
    %v224 = vld [vmem:[#allocation3 + $0x3c] sm:$0xff]
    %v225 = vld [vmem:[#allocation3 + $0x44] sm:$0xf]
    %v226 = vld [vmem:[#allocation3 + $0x48] sm:$0xff]
    %v227 = vld [vmem:[#allocation3 + $0x50] sm:$0xf]
    %v228 = vld [vmem:[#allocation3 + $0x54] sm:$0xff]
    %v229 = vld [vmem:[#allocation3 + $0x5c] sm:$0xf]
    %v230 = vld [vmem:[#allocation3 + $0x60] sm:$0xff]
    %v231 = vld [vmem:[#allocation3 + $0x68] sm:$0xf]
    %v232 = vld [vmem:[#allocation3 + $0x6c] sm:$0xff]
    %v233 = vld [vmem:[#allocation3 + $0x74] sm:$0xf]
    %v234 = vld [vmem:[#allocation3 + $0x78] sm:$0xff]
    %v235 = vld [vmem:[#allocation3 + $0x80] sm:$0xf]
    %v236 = vld [vmem:[#allocation3 + $0x84] sm:$0xff]
    %v237 = vld [vmem:[#allocation3 + $0x8c] sm:$0xf]
    %v238 = vld [vmem:[#allocation3 + $0x90] sm:$0xff]
    %v239 = vld [vmem:[#allocation3 + $0x98] sm:$0xf]
    %v240 = vld [vmem:[#allocation3 + $0x9c] sm:$0xff]
    %v241 = vld [vmem:[#allocation3 + $0xa4] sm:$0xf]
    %v242 = vld [vmem:[#allocation3 + $0xa8] sm:$0xff]
    %v243 = vld [vmem:[#allocation3 + $0xb0] sm:$0xf]
    %v244 = vld [vmem:[#allocation3 + $0xb4] sm:$0xff]
    %v245 = vld [vmem:[#allocation3 + $0xbc] sm:$0xf]
    %v246 = vld [vmem:[%s5] sm:$0x7]
    %v248 = vlaneseq
    %v249 = vshrl.u32 %v248, 7
    %v250 = vsub.s32 0, %v249
    %v251 = vrot.slane %v246, %v250
    %v252 = vlaneseq
    %v253 = vshrl.u32 %v252, 7
    %v254 = vsub.s32 1, %v253
    %v255 = vrot.slane %v246, %v254
    %v256 = vlaneseq
    %v257 = vshrl.u32 %v256, 7
    %v258 = vsub.s32 2, %v257
    %v259 = vrot.slane %v246, %v258
    %v295 = vunpack.c.l.b16 %v214
    %v296 = vunpack.c.h.b16 %v214
    %v297 = vunpack.c.l.b16 %v215
    %v298 = vunpack.c.l.b16 %v216
    %v299 = vunpack.c.h.b16 %v216
    %v300 = vunpack.c.l.b16 %v217
    %v301 = vunpack.c.l.b16 %v218
    %v302 = vunpack.c.h.b16 %v218
    %v303 = vunpack.c.l.b16 %v219
    %v304 = vunpack.c.l.b16 %v220
    %v305 = vunpack.c.h.b16 %v220
    %v306 = vunpack.c.l.b16 %v221
    %v307 = vunpack.c.l.b16 %v222
    %v308 = vunpack.c.h.b16 %v222
    %v309 = vunpack.c.l.b16 %v223
    %v310 = vunpack.c.l.b16 %v224
    %v311 = vunpack.c.h.b16 %v224
    %v312 = vunpack.c.l.b16 %v225
    %v313 = vunpack.c.l.b16 %v226
    %v314 = vunpack.c.h.b16 %v226
    %v315 = vunpack.c.l.b16 %v227
    %v316 = vunpack.c.l.b16 %v228
    %v317 = vunpack.c.h.b16 %v228
    %v318 = vunpack.c.l.b16 %v229
    %v319 = vunpack.c.l.b16 %v230
    %v320 = vunpack.c.h.b16 %v230
    %v321 = vunpack.c.l.b16 %v231
    %v322 = vunpack.c.l.b16 %v232
    %v323 = vunpack.c.h.b16 %v232
    %v324 = vunpack.c.l.b16 %v233
    %v325 = vunpack.c.l.b16 %v234
    %v326 = vunpack.c.h.b16 %v234
    %v327 = vunpack.c.l.b16 %v235
    %v328 = vunpack.c.l.b16 %v236
    %v329 = vunpack.c.h.b16 %v236
    %v330 = vunpack.c.l.b16 %v237
    %v331 = vunpack.c.l.b16 %v238
    %v332 = vunpack.c.h.b16 %v238
    %v333 = vunpack.c.l.b16 %v239
    %v334 = vunpack.c.l.b16 %v240
    %v335 = vunpack.c.h.b16 %v240
    %v336 = vunpack.c.l.b16 %v241
    %v337 = vunpack.c.l.b16 %v242
    %v338 = vunpack.c.h.b16 %v242
    %v339 = vunpack.c.l.b16 %v243
    %v340 = vunpack.c.l.b16 %v244
    %v341 = vunpack.c.h.b16 %v244
    %v342 = vunpack.c.l.b16 %v245
    %v343 = vpack.c.b16 %v298, %v295
    %v344 = vpack.c.b16 %v299, %v296
    %v345 = vpack.c.b16 %v300, %v297
    %v346 = vpack.c.b16 %v304, %v301
    %v347 = vpack.c.b16 %v305, %v302
    %v348 = vpack.c.b16 %v306, %v303
    %v349 = vpack.c.b16 %v310, %v307
    %v350 = vpack.c.b16 %v311, %v308
    %v351 = vpack.c.b16 %v312, %v309
    %v352 = vpack.c.b16 %v316, %v313
    %v353 = vpack.c.b16 %v317, %v314
    %v354 = vpack.c.b16 %v318, %v315
    %v355 = vpack.c.b16 %v322, %v319
    %v356 = vpack.c.b16 %v323, %v320
    %v357 = vpack.c.b16 %v324, %v321
    %v358 = vpack.c.b16 %v328, %v325
    %v359 = vpack.c.b16 %v329, %v326
    %v360 = vpack.c.b16 %v330, %v327
    %v361 = vpack.c.b16 %v334, %v331
    %v362 = vpack.c.b16 %v335, %v332
    %v363 = vpack.c.b16 %v336, %v333
    %v364 = vpack.c.b16 %v340, %v337
    %v365 = vpack.c.b16 %v341, %v338
    %v366 = vpack.c.b16 %v342, %v339
    %391 = vmatprep.subr.bf16.mxu0 %v365
    %392 = vmatpush1.bf16.msra.mxu0 %v364
    %393 = vmatprep.subr.bf16.mxu0 %v362
    %394 = vmatpush1.bf16.msra.mxu0 %v361
    %395 = vmatprep.subr.bf16.mxu0 %v359
    %396 = vmatpush1.bf16.msra.mxu0 %v358
    %397 = vmatprep.subr.bf16.mxu0 %v356
    %398 = vmatpush1.bf16.msra.mxu0 %v355
    %399 = vmatprep.subr.bf16.mxu0 %v353
    %400 = vmatpush1.bf16.msra.mxu0 %v352
    %401 = vmatprep.subr.bf16.mxu0 %v350
    %402 = vmatpush1.bf16.msra.mxu0 %v349
    %403 = vmatprep.subr.bf16.mxu0 %v347
    %404 = vmatpush1.bf16.msra.mxu0 %v346
    %405 = vmatprep.subr.bf16.mxu0 %v344
    %406 = vmatpush1.bf16.msra.mxu0 %v343
    %407 = vmatprep.subr.bf16.mxu0 0
    %408 = vmatpush2.bf16.msra.mxu0 0
    %409 = vmatprep.subr.bf16.mxu0 0
    %410 = vmatpush2.bf16.msra.mxu0 0
    %411 = vmatprep.subr.bf16.mxu0 0
    %412 = vmatpush2.bf16.msra.mxu0 0
    %413 = vmatprep.subr.bf16.mxu0 0
    %414 = vmatpush2.bf16.msra.mxu0 0
    %415 = vmatprep.subr.bf16.mxu0 0
    %416 = vmatpush2.bf16.msra.mxu0 0
    %417 = vmatprep.subr.bf16.mxu0 0
    %418 = vmatpush2.bf16.msra.mxu0 0
    %419 = vmatprep.subr.bf16.mxu0 0
    %420 = vmatpush2.bf16.msra.mxu0 0
    %421 = vmatprep.subr.bf16.mxu0 0
    %422 = vmatpush2.bf16.msra.mxu0 0
    %423 = vmatprep.mubr.bf16.mxu0 0
    %424 = vmatmul.mubr.bf16.gmra.mxu0 %v210
    %v425 = vpop.f32.mrf.mxu0
    %v426 = vadd.f32 %v251, %v425
    %v427 = vpop.f32.mrf.mxu0
    %v428 = vadd.f32 %v255, %v427
    %v429 = vpop.f32.mrf.mxu0
    %v430 = vadd.f32 %v251, %v429
    %v431 = vpop.f32.mrf.mxu0
    %v432 = vadd.f32 %v255, %v431
    %433 = vmatprep.mubr.bf16.mxu0 0
    %434 = vmatmul.mubr.bf16.gmra.mxu0 %v211
    %v435 = vpop.f32.mrf.mxu0
    %v436 = vadd.f32 %v251, %v435
    %v437 = vpop.f32.mrf.mxu0
    %v438 = vadd.f32 %v255, %v437
    %v439 = vpop.f32.mrf.mxu0
    %v440 = vadd.f32 %v251, %v439
    %v441 = vpop.f32.mrf.mxu0
    %v442 = vadd.f32 %v255, %v441
    %443 = vmatprep.mubr.bf16.mxu0 0
    %444 = vmatmul.mubr.bf16.gmra.mxu0 %v212
    %v445 = vpop.f32.mrf.mxu0
    %v446 = vadd.f32 %v251, %v445
    %v447 = vpop.f32.mrf.mxu0
    %v448 = vadd.f32 %v255, %v447
    %v449 = vpop.f32.mrf.mxu0
    %v450 = vadd.f32 %v251, %v449
    %v451 = vpop.f32.mrf.mxu0
    %v452 = vadd.f32 %v255, %v451
    %453 = vmatprep.mubr.bf16.mxu0 0
    %454 = vmatmul.mubr.bf16.gmra.mxu0 %v213
    %v455 = vpop.f32.mrf.mxu0
    %v456 = vadd.f32 %v251, %v455
    %v457 = vpop.f32.mrf.mxu0
    %v458 = vadd.f32 %v255, %v457
    %v459 = vpop.f32.mrf.mxu0
    %v460 = vadd.f32 %v251, %v459
    %v461 = vpop.f32.mrf.mxu0
    %v462 = vadd.f32 %v255, %v461
    %463 = vdwg.mxu0
    %464 = vmatprep.subr.bf16.mxu0 0
    %465 = vmatpush1.bf16.msra.mxu0 %v366
    %466 = vmatprep.subr.bf16.mxu0 0
    %467 = vmatpush1.bf16.msra.mxu0 %v363
    %468 = vmatprep.subr.bf16.mxu0 0
    %469 = vmatpush1.bf16.msra.mxu0 %v360
    %470 = vmatprep.subr.bf16.mxu0 0
    %471 = vmatpush1.bf16.msra.mxu0 %v357
    %472 = vmatprep.subr.bf16.mxu0 0
    %473 = vmatpush1.bf16.msra.mxu0 %v354
    %474 = vmatprep.subr.bf16.mxu0 0
    %475 = vmatpush1.bf16.msra.mxu0 %v351
    %476 = vmatprep.subr.bf16.mxu0 0
    %477 = vmatpush1.bf16.msra.mxu0 %v348
    %478 = vmatprep.subr.bf16.mxu0 0
    %479 = vmatpush1.bf16.msra.mxu0 %v345
    %480 = vmatprep.subr.bf16.mxu0 0
    %481 = vmatpush2.bf16.msra.mxu0 0
    %482 = vmatprep.subr.bf16.mxu0 0
    %483 = vmatpush2.bf16.msra.mxu0 0
    %484 = vmatprep.subr.bf16.mxu0 0
    %485 = vmatpush2.bf16.msra.mxu0 0
    %486 = vmatprep.subr.bf16.mxu0 0
    %487 = vmatpush2.bf16.msra.mxu0 0
    %488 = vmatprep.subr.bf16.mxu0 0
    %489 = vmatpush2.bf16.msra.mxu0 0
    %490 = vmatprep.subr.bf16.mxu0 0
    %491 = vmatpush2.bf16.msra.mxu0 0
    %492 = vmatprep.subr.bf16.mxu0 0
    %493 = vmatpush2.bf16.msra.mxu0 0
    %494 = vmatprep.subr.bf16.mxu0 0
    %495 = vmatpush2.bf16.msra.mxu0 0
    %496 = vmatprep.mubr.bf16.mxu0 0
    %497 = vmatmul.mubr.bf16.gmra.mxu0 %v210
    %v498 = vpop.f32.mrf.mxu0
    %v499 = vadd.f32 %v259, %v498
    %v500 = vpop.f32.mrf.mxu0
    %v501 = vpop.f32.mrf.mxu0
    %v502 = vadd.f32 %v259, %v501
    %v503 = vpop.f32.mrf.mxu0
    %504 = vmatprep.mubr.bf16.mxu0 0
    %505 = vmatmul.mubr.bf16.gmra.mxu0 %v211
    %v506 = vpop.f32.mrf.mxu0
    %v507 = vadd.f32 %v259, %v506
    %v508 = vpop.f32.mrf.mxu0
    %v509 = vpop.f32.mrf.mxu0
    %v510 = vadd.f32 %v259, %v509
    %v511 = vpop.f32.mrf.mxu0
    %512 = vmatprep.mubr.bf16.mxu0 0
    %513 = vmatmul.mubr.bf16.gmra.mxu0 %v212
    %v514 = vpop.f32.mrf.mxu0
    %v515 = vadd.f32 %v259, %v514
    %v516 = vpop.f32.mrf.mxu0
    %v517 = vpop.f32.mrf.mxu0
    %v518 = vadd.f32 %v259, %v517
    %v519 = vpop.f32.mrf.mxu0
    %520 = vmatprep.mubr.bf16.mxu0 0
    %521 = vmatmul.mubr.bf16.gmra.mxu0 %v213
    %v522 = vpop.f32.mrf.mxu0
    %v523 = vadd.f32 %v259, %v522
    %v524 = vpop.f32.mrf.mxu0
    %v525 = vpop.f32.mrf.mxu0
    %v526 = vadd.f32 %v259, %v525
    %v527 = vpop.f32.mrf.mxu0
    %528 = vdwg.mxu0
    %v529 = vld [vmem:[#allocation6] sm:$0xff]
    %v530 = vld [vmem:[#allocation6 + $0x8] sm:$0xf]
    %v531 = vld [vmem:[#allocation6 + $0xc] sm:$0xff]
    %v532 = vld [vmem:[#allocation6 + $0x14] sm:$0xf]
    %v533 = vld [vmem:[#allocation6 + $0x18] sm:$0xff]
    %v534 = vld [vmem:[#allocation6 + $0x20] sm:$0xf]
    %v535 = vld [vmem:[#allocation6 + $0x24] sm:$0xff]
    %v536 = vld [vmem:[#allocation6 + $0x2c] sm:$0xf]
    %v537 = vld [vmem:[#allocation6 + $0x30] sm:$0xff]
    %v538 = vld [vmem:[#allocation6 + $0x38] sm:$0xf]
    %v539 = vld [vmem:[#allocation6 + $0x3c] sm:$0xff]
    %v540 = vld [vmem:[#allocation6 + $0x44] sm:$0xf]
    %v541 = vld [vmem:[#allocation6 + $0x48] sm:$0xff]
    %v542 = vld [vmem:[#allocation6 + $0x50] sm:$0xf]
    %v543 = vld [vmem:[#allocation6 + $0x54] sm:$0xff]
    %v544 = vld [vmem:[#allocation6 + $0x5c] sm:$0xf]
    %v545 = vld [vmem:[#allocation6 + $0x60] sm:$0xff]
    %v546 = vld [vmem:[#allocation6 + $0x68] sm:$0xf]
    %v547 = vld [vmem:[#allocation6 + $0x6c] sm:$0xff]
    %v548 = vld [vmem:[#allocation6 + $0x74] sm:$0xf]
    %v549 = vld [vmem:[#allocation6 + $0x78] sm:$0xff]
    %v550 = vld [vmem:[#allocation6 + $0x80] sm:$0xf]
    %v551 = vld [vmem:[#allocation6 + $0x84] sm:$0xff]
    %v552 = vld [vmem:[#allocation6 + $0x8c] sm:$0xf]
    %v553 = vld [vmem:[#allocation6 + $0x90] sm:$0xff]
    %v554 = vld [vmem:[#allocation6 + $0x98] sm:$0xf]
    %v555 = vld [vmem:[#allocation6 + $0x9c] sm:$0xff]
    %v556 = vld [vmem:[#allocation6 + $0xa4] sm:$0xf]
    %v557 = vld [vmem:[#allocation6 + $0xa8] sm:$0xff]
    %v558 = vld [vmem:[#allocation6 + $0xb0] sm:$0xf]
    %v559 = vld [vmem:[#allocation6 + $0xb4] sm:$0xff]
    %v560 = vld [vmem:[#allocation6 + $0xbc] sm:$0xf]
    %v561 = vld [vmem:[%s7] sm:$0x7]
    %v563 = vlaneseq
    %v564 = vshrl.u32 %v563, 7
    %v565 = vsub.s32 0, %v564
    %v566 = vrot.slane %v561, %v565
    %v567 = vlaneseq
    %v568 = vshrl.u32 %v567, 7
    %v569 = vsub.s32 1, %v568
    %v570 = vrot.slane %v561, %v569
    %v571 = vlaneseq
    %v572 = vshrl.u32 %v571, 7
    %v573 = vsub.s32 2, %v572
    %v574 = vrot.slane %v561, %v573
    %v578 = vld [vmem:[%s1] sm:$0xff]
    %v579 = vpack.c.bf16 %v578, %v578
    %v612 = vunpack.c.l.b16 %v529
    %v613 = vunpack.c.h.b16 %v529
    %v614 = vunpack.c.l.b16 %v530
    %v615 = vunpack.c.l.b16 %v531
    %v616 = vunpack.c.h.b16 %v531
    %v617 = vunpack.c.l.b16 %v532
    %v618 = vunpack.c.l.b16 %v533
    %v619 = vunpack.c.h.b16 %v533
    %v620 = vunpack.c.l.b16 %v534
    %v621 = vunpack.c.l.b16 %v535
    %v622 = vunpack.c.h.b16 %v535
    %v623 = vunpack.c.l.b16 %v536
    %v624 = vunpack.c.l.b16 %v537
    %v625 = vunpack.c.h.b16 %v537
    %v626 = vunpack.c.l.b16 %v538
    %v627 = vunpack.c.l.b16 %v539
    %v628 = vunpack.c.h.b16 %v539
    %v629 = vunpack.c.l.b16 %v540
    %v630 = vunpack.c.l.b16 %v541
    %v631 = vunpack.c.h.b16 %v541
    %v632 = vunpack.c.l.b16 %v542
    %v633 = vunpack.c.l.b16 %v543
    %v634 = vunpack.c.h.b16 %v543
    %v635 = vunpack.c.l.b16 %v544
    %v636 = vunpack.c.l.b16 %v545
    %v637 = vunpack.c.h.b16 %v545
    %v638 = vunpack.c.l.b16 %v546
    %v639 = vunpack.c.l.b16 %v547
    %v640 = vunpack.c.h.b16 %v547
    %v641 = vunpack.c.l.b16 %v548
    %v642 = vunpack.c.l.b16 %v549
    %v643 = vunpack.c.h.b16 %v549
    %v644 = vunpack.c.l.b16 %v550
    %v645 = vunpack.c.l.b16 %v551
    %v646 = vunpack.c.h.b16 %v551
    %v647 = vunpack.c.l.b16 %v552
    %v648 = vunpack.c.l.b16 %v553
    %v649 = vunpack.c.h.b16 %v553
    %v650 = vunpack.c.l.b16 %v554
    %v651 = vunpack.c.l.b16 %v555
    %v652 = vunpack.c.h.b16 %v555
    %v653 = vunpack.c.l.b16 %v556
    %v654 = vunpack.c.l.b16 %v557
    %v655 = vunpack.c.h.b16 %v557
    %v656 = vunpack.c.l.b16 %v558
    %v657 = vunpack.c.l.b16 %v559
    %v658 = vunpack.c.h.b16 %v559
    %v659 = vunpack.c.l.b16 %v560
    %v660 = vpack.c.b16 %v615, %v612
    %v661 = vpack.c.b16 %v616, %v613
    %v662 = vpack.c.b16 %v617, %v614
    %v663 = vpack.c.b16 %v621, %v618
    %v664 = vpack.c.b16 %v622, %v619
    %v665 = vpack.c.b16 %v623, %v620
    %v666 = vpack.c.b16 %v627, %v624
    %v667 = vpack.c.b16 %v628, %v625
    %v668 = vpack.c.b16 %v629, %v626
    %v669 = vpack.c.b16 %v633, %v630
    %v670 = vpack.c.b16 %v634, %v631
    %v671 = vpack.c.b16 %v635, %v632
    %v672 = vpack.c.b16 %v639, %v636
    %v673 = vpack.c.b16 %v640, %v637
    %v674 = vpack.c.b16 %v641, %v638
    %v675 = vpack.c.b16 %v645, %v642
    %v676 = vpack.c.b16 %v646, %v643
    %v677 = vpack.c.b16 %v647, %v644
    %v678 = vpack.c.b16 %v651, %v648
    %v679 = vpack.c.b16 %v652, %v649
    %v680 = vpack.c.b16 %v653, %v650
    %v681 = vpack.c.b16 %v657, %v654
    %v682 = vpack.c.b16 %v658, %v655
    %v683 = vpack.c.b16 %v659, %v656
    %708 = vmatprep.subr.bf16.mxu0 %v682
    %709 = vmatpush1.bf16.msra.mxu0 %v681
    %710 = vmatprep.subr.bf16.mxu0 %v679
    %711 = vmatpush1.bf16.msra.mxu0 %v678
    %712 = vmatprep.subr.bf16.mxu0 %v676
    %713 = vmatpush1.bf16.msra.mxu0 %v675
    %714 = vmatprep.subr.bf16.mxu0 %v673
    %715 = vmatpush1.bf16.msra.mxu0 %v672
    %716 = vmatprep.subr.bf16.mxu0 %v670
    %717 = vmatpush1.bf16.msra.mxu0 %v669
    %718 = vmatprep.subr.bf16.mxu0 %v667
    %719 = vmatpush1.bf16.msra.mxu0 %v666
    %720 = vmatprep.subr.bf16.mxu0 %v664
    %721 = vmatpush1.bf16.msra.mxu0 %v663
    %722 = vmatprep.subr.bf16.mxu0 %v661
    %723 = vmatpush1.bf16.msra.mxu0 %v660
    %724 = vmatprep.subr.bf16.mxu0 0
    %725 = vmatpush2.bf16.msra.mxu0 0
    %726 = vmatprep.subr.bf16.mxu0 0
    %727 = vmatpush2.bf16.msra.mxu0 0
    %728 = vmatprep.subr.bf16.mxu0 0
    %729 = vmatpush2.bf16.msra.mxu0 0
    %730 = vmatprep.subr.bf16.mxu0 0
    %731 = vmatpush2.bf16.msra.mxu0 0
    %732 = vmatprep.subr.bf16.mxu0 0
    %733 = vmatpush2.bf16.msra.mxu0 0
    %734 = vmatprep.subr.bf16.mxu0 0
    %735 = vmatpush2.bf16.msra.mxu0 0
    %736 = vmatprep.subr.bf16.mxu0 0
    %737 = vmatpush2.bf16.msra.mxu0 0
    %738 = vmatprep.subr.bf16.mxu0 0
    %739 = vmatpush2.bf16.msra.mxu0 0
    %740 = vmatprep.mubr.bf16.mxu0 0
    %741 = vmatmul.mubr.bf16.gmra.mxu0 %v579
    %v742 = vpop.f32.mrf.mxu0
    %v743 = vadd.f32 %v566, %v742
    %v744 = vpop.f32.mrf.mxu0
    %v745 = vadd.f32 %v570, %v744
    %v746 = vpop.f32.mrf.mxu0
    %v747 = vpop.f32.mrf.mxu0
    %748 = vdwg.mxu0
    %749 = vmatprep.subr.bf16.mxu0 0
    %750 = vmatpush1.bf16.msra.mxu0 %v683
    %751 = vmatprep.subr.bf16.mxu0 0
    %752 = vmatpush1.bf16.msra.mxu0 %v680
    %753 = vmatprep.subr.bf16.mxu0 0
    %754 = vmatpush1.bf16.msra.mxu0 %v677
    %755 = vmatprep.subr.bf16.mxu0 0
    %756 = vmatpush1.bf16.msra.mxu0 %v674
    %757 = vmatprep.subr.bf16.mxu0 0
    %758 = vmatpush1.bf16.msra.mxu0 %v671
    %759 = vmatprep.subr.bf16.mxu0 0
    %760 = vmatpush1.bf16.msra.mxu0 %v668
    %761 = vmatprep.subr.bf16.mxu0 0
    %762 = vmatpush1.bf16.msra.mxu0 %v665
    %763 = vmatprep.subr.bf16.mxu0 0
    %764 = vmatpush1.bf16.msra.mxu0 %v662
    %765 = vmatprep.subr.bf16.mxu0 0
    %766 = vmatpush2.bf16.msra.mxu0 0
    %767 = vmatprep.subr.bf16.mxu0 0
    %768 = vmatpush2.bf16.msra.mxu0 0
    %769 = vmatprep.subr.bf16.mxu0 0
    %770 = vmatpush2.bf16.msra.mxu0 0
    %771 = vmatprep.subr.bf16.mxu0 0
    %772 = vmatpush2.bf16.msra.mxu0 0
    %773 = vmatprep.subr.bf16.mxu0 0
    %774 = vmatpush2.bf16.msra.mxu0 0
    %775 = vmatprep.subr.bf16.mxu0 0
    %776 = vmatpush2.bf16.msra.mxu0 0
    %777 = vmatprep.subr.bf16.mxu0 0
    %778 = vmatpush2.bf16.msra.mxu0 0
    %779 = vmatprep.subr.bf16.mxu0 0
    %780 = vmatpush2.bf16.msra.mxu0 0
    %781 = vmatprep.mubr.bf16.mxu0 0
    %782 = vmatmul.mubr.bf16.gmra.mxu0 %v579
    %v783 = vpop.f32.mrf.mxu0
    %v784 = vadd.f32 %v574, %v783
    %v785 = vpop.f32.mrf.mxu0
    %v786 = vpop.f32.mrf.mxu0
    %v787 = vpop.f32.mrf.mxu0
    %788 = vdwg.mxu0
    %v789 = vadd.f32 %v426, %v743
    %v790 = vxor.u32 %v789, 2147483648
    %v791 = vmul.f32 %v790, 1.442695
    %v792 = vpow.pop %v791
    %v793 = vadd.f32 %v792, 1.0
    %v794 = vrcp.pop %v793
    %v795 = vmul.f32 1.0, %v794
    %v796 = vadd.f32 %v428, %v745
    %v797 = vxor.u32 %v796, 2147483648
    %v798 = vmul.f32 %v797, 1.442695
    %v799 = vpow.pop %v798
    %v800 = vadd.f32 %v799, 1.0
    %v801 = vrcp.pop %v800
    %v802 = vmul.f32 1.0, %v801
    %v803 = vmul.f32 %v795, %v784
    %v804 = vadd.f32 %v499, %v803
    %v805 = vtanh.pop %v804
    %v806 = vsub.f32 1.0, %v802
    %v807 = vmul.f32 %v806, %v805
    %v808 = vmul.f32 %v802, %v578
    %v809 = vadd.f32 %v807, %v808
    %810 = vst [vmem:[#allocation2] sm:$0xff] %v809
    %v811 = vpack.c.bf16 %v809, %v809
    %812 = vmatprep.subr.bf16.mxu0 %v682
    %813 = vmatpush1.bf16.msra.mxu0 %v681
    %814 = vmatprep.subr.bf16.mxu0 %v679
    %815 = vmatpush1.bf16.msra.mxu0 %v678
    %816 = vmatprep.subr.bf16.mxu0 %v676
    %817 = vmatpush1.bf16.msra.mxu0 %v675
    %818 = vmatprep.subr.bf16.mxu0 %v673
    %819 = vmatpush1.bf16.msra.mxu0 %v672
    %820 = vmatprep.subr.bf16.mxu0 %v670
    %821 = vmatpush1.bf16.msra.mxu0 %v669
    %822 = vmatprep.subr.bf16.mxu0 %v667
    %823 = vmatpush1.bf16.msra.mxu0 %v666
    %824 = vmatprep.subr.bf16.mxu0 %v664
    %825 = vmatpush1.bf16.msra.mxu0 %v663
    %826 = vmatprep.subr.bf16.mxu0 %v661
    %827 = vmatpush1.bf16.msra.mxu0 %v660
    %828 = vmatprep.subr.bf16.mxu0 0
    %829 = vmatpush2.bf16.msra.mxu0 0
    %830 = vmatprep.subr.bf16.mxu0 0
    %831 = vmatpush2.bf16.msra.mxu0 0
    %832 = vmatprep.subr.bf16.mxu0 0
    %833 = vmatpush2.bf16.msra.mxu0 0
    %834 = vmatprep.subr.bf16.mxu0 0
    %835 = vmatpush2.bf16.msra.mxu0 0
    %836 = vmatprep.subr.bf16.mxu0 0
    %837 = vmatpush2.bf16.msra.mxu0 0
    %838 = vmatprep.subr.bf16.mxu0 0
    %839 = vmatpush2.bf16.msra.mxu0 0
    %840 = vmatprep.subr.bf16.mxu0 0
    %841 = vmatpush2.bf16.msra.mxu0 0
    %842 = vmatprep.subr.bf16.mxu0 0
    %843 = vmatpush2.bf16.msra.mxu0 0
    %844 = vmatprep.mubr.bf16.mxu0 0
    %845 = vmatmul.mubr.bf16.gmra.mxu0 %v811
    %v846 = vpop.f32.mrf.mxu0
    %v847 = vadd.f32 %v566, %v846
    %v848 = vpop.f32.mrf.mxu0
    %v849 = vadd.f32 %v570, %v848
    %v850 = vpop.f32.mrf.mxu0
    %v851 = vpop.f32.mrf.mxu0
    %852 = vdwg.mxu0
    %853 = vmatprep.subr.bf16.mxu0 0
    %854 = vmatpush1.bf16.msra.mxu0 %v683
    %855 = vmatprep.subr.bf16.mxu0 0
    %856 = vmatpush1.bf16.msra.mxu0 %v680
    %857 = vmatprep.subr.bf16.mxu0 0
    %858 = vmatpush1.bf16.msra.mxu0 %v677
    %859 = vmatprep.subr.bf16.mxu0 0
    %860 = vmatpush1.bf16.msra.mxu0 %v674
    %861 = vmatprep.subr.bf16.mxu0 0
    %862 = vmatpush1.bf16.msra.mxu0 %v671
    %863 = vmatprep.subr.bf16.mxu0 0
    %864 = vmatpush1.bf16.msra.mxu0 %v668
    %865 = vmatprep.subr.bf16.mxu0 0
    %866 = vmatpush1.bf16.msra.mxu0 %v665
    %867 = vmatprep.subr.bf16.mxu0 0
    %868 = vmatpush1.bf16.msra.mxu0 %v662
    %869 = vmatprep.subr.bf16.mxu0 0
    %870 = vmatpush2.bf16.msra.mxu0 0
    %871 = vmatprep.subr.bf16.mxu0 0
    %872 = vmatpush2.bf16.msra.mxu0 0
    %873 = vmatprep.subr.bf16.mxu0 0
    %874 = vmatpush2.bf16.msra.mxu0 0
    %875 = vmatprep.subr.bf16.mxu0 0
    %876 = vmatpush2.bf16.msra.mxu0 0
    %877 = vmatprep.subr.bf16.mxu0 0
    %878 = vmatpush2.bf16.msra.mxu0 0
    %879 = vmatprep.subr.bf16.mxu0 0
    %880 = vmatpush2.bf16.msra.mxu0 0
    %881 = vmatprep.subr.bf16.mxu0 0
    %882 = vmatpush2.bf16.msra.mxu0 0
    %883 = vmatprep.subr.bf16.mxu0 0
    %884 = vmatpush2.bf16.msra.mxu0 0
    %885 = vmatprep.mubr.bf16.mxu0 0
    %886 = vmatmul.mubr.bf16.gmra.mxu0 %v811
    %v887 = vpop.f32.mrf.mxu0
    %v888 = vadd.f32 %v574, %v887
    %v889 = vpop.f32.mrf.mxu0
    %v890 = vpop.f32.mrf.mxu0
    %v891 = vpop.f32.mrf.mxu0
    %892 = vdwg.mxu0
    %v893 = vadd.f32 %v430, %v847
    %v894 = vxor.u32 %v893, 2147483648
    %v895 = vmul.f32 %v894, 1.442695
    %v896 = vpow.pop %v895
    %v897 = vadd.f32 %v896, 1.0
    %v898 = vrcp.pop %v897
    %v899 = vmul.f32 1.0, %v898
    %v900 = vadd.f32 %v432, %v849
    %v901 = vxor.u32 %v900, 2147483648
    %v902 = vmul.f32 %v901, 1.442695
    %v903 = vpow.pop %v902
    %v904 = vadd.f32 %v903, 1.0
    %v905 = vrcp.pop %v904
    %v906 = vmul.f32 1.0, %v905
    %v907 = vmul.f32 %v899, %v888
    %v908 = vadd.f32 %v502, %v907
    %v909 = vtanh.pop %v908
    %v910 = vsub.f32 1.0, %v906
    %v911 = vmul.f32 %v910, %v909
    %v912 = vmul.f32 %v906, %v809
    %v913 = vadd.f32 %v911, %v912
    %914 = vst [vmem:[#allocation2 + $0x8] sm:$0xff] %v913
    %v915 = vpack.c.bf16 %v913, %v913
    %916 = vmatprep.subr.bf16.mxu0 %v682
    %917 = vmatpush1.bf16.msra.mxu0 %v681
    %918 = vmatprep.subr.bf16.mxu0 %v679
    %919 = vmatpush1.bf16.msra.mxu0 %v678
    %920 = vmatprep.subr.bf16.mxu0 %v676
    %921 = vmatpush1.bf16.msra.mxu0 %v675
    %922 = vmatprep.subr.bf16.mxu0 %v673
    %923 = vmatpush1.bf16.msra.mxu0 %v672
    %924 = vmatprep.subr.bf16.mxu0 %v670
    %925 = vmatpush1.bf16.msra.mxu0 %v669
    %926 = vmatprep.subr.bf16.mxu0 %v667
    %927 = vmatpush1.bf16.msra.mxu0 %v666
    %928 = vmatprep.subr.bf16.mxu0 %v664
    %929 = vmatpush1.bf16.msra.mxu0 %v663
    %930 = vmatprep.subr.bf16.mxu0 %v661
    %931 = vmatpush1.bf16.msra.mxu0 %v660
    %932 = vmatprep.subr.bf16.mxu0 0
    %933 = vmatpush2.bf16.msra.mxu0 0
    %934 = vmatprep.subr.bf16.mxu0 0
    %935 = vmatpush2.bf16.msra.mxu0 0
    %936 = vmatprep.subr.bf16.mxu0 0
    %937 = vmatpush2.bf16.msra.mxu0 0
    %938 = vmatprep.subr.bf16.mxu0 0
    %939 = vmatpush2.bf16.msra.mxu0 0
    %940 = vmatprep.subr.bf16.mxu0 0
    %941 = vmatpush2.bf16.msra.mxu0 0
    %942 = vmatprep.subr.bf16.mxu0 0
    %943 = vmatpush2.bf16.msra.mxu0 0
    %944 = vmatprep.subr.bf16.mxu0 0
    %945 = vmatpush2.bf16.msra.mxu0 0
    %946 = vmatprep.subr.bf16.mxu0 0
    %947 = vmatpush2.bf16.msra.mxu0 0
    %948 = vmatprep.mubr.bf16.mxu0 0
    %949 = vmatmul.mubr.bf16.gmra.mxu0 %v915
    %v950 = vpop.f32.mrf.mxu0
    %v951 = vadd.f32 %v566, %v950
    %v952 = vpop.f32.mrf.mxu0
    %v953 = vadd.f32 %v570, %v952
    %v954 = vpop.f32.mrf.mxu0
    %v955 = vpop.f32.mrf.mxu0
    %956 = vdwg.mxu0
    %957 = vmatprep.subr.bf16.mxu0 0
    %958 = vmatpush1.bf16.msra.mxu0 %v683
    %959 = vmatprep.subr.bf16.mxu0 0
    %960 = vmatpush1.bf16.msra.mxu0 %v680
    %961 = vmatprep.subr.bf16.mxu0 0
    %962 = vmatpush1.bf16.msra.mxu0 %v677
    %963 = vmatprep.subr.bf16.mxu0 0
    %964 = vmatpush1.bf16.msra.mxu0 %v674
    %965 = vmatprep.subr.bf16.mxu0 0
    %966 = vmatpush1.bf16.msra.mxu0 %v671
    %967 = vmatprep.subr.bf16.mxu0 0
    %968 = vmatpush1.bf16.msra.mxu0 %v668
    %969 = vmatprep.subr.bf16.mxu0 0
    %970 = vmatpush1.bf16.msra.mxu0 %v665
    %971 = vmatprep.subr.bf16.mxu0 0
    %972 = vmatpush1.bf16.msra.mxu0 %v662
    %973 = vmatprep.subr.bf16.mxu0 0
    %974 = vmatpush2.bf16.msra.mxu0 0
    %975 = vmatprep.subr.bf16.mxu0 0
    %976 = vmatpush2.bf16.msra.mxu0 0
    %977 = vmatprep.subr.bf16.mxu0 0
    %978 = vmatpush2.bf16.msra.mxu0 0
    %979 = vmatprep.subr.bf16.mxu0 0
    %980 = vmatpush2.bf16.msra.mxu0 0
    %981 = vmatprep.subr.bf16.mxu0 0
    %982 = vmatpush2.bf16.msra.mxu0 0
    %983 = vmatprep.subr.bf16.mxu0 0
    %984 = vmatpush2.bf16.msra.mxu0 0
    %985 = vmatprep.subr.bf16.mxu0 0
    %986 = vmatpush2.bf16.msra.mxu0 0
    %987 = vmatprep.subr.bf16.mxu0 0
    %988 = vmatpush2.bf16.msra.mxu0 0
    %989 = vmatprep.mubr.bf16.mxu0 0
    %990 = vmatmul.mubr.bf16.gmra.mxu0 %v915
    %v991 = vpop.f32.mrf.mxu0
    %v992 = vadd.f32 %v574, %v991
    %v993 = vpop.f32.mrf.mxu0
    %v994 = vpop.f32.mrf.mxu0
    %v995 = vpop.f32.mrf.mxu0
    %996 = vdwg.mxu0
    %v997 = vadd.f32 %v436, %v951
    %v998 = vxor.u32 %v997, 2147483648
    %v999 = vmul.f32 %v998, 1.442695
    %v1000 = vpow.pop %v999
    %v1001 = vadd.f32 %v1000, 1.0
    %v1002 = vrcp.pop %v1001
    %v1003 = vmul.f32 1.0, %v1002
    %v1004 = vadd.f32 %v438, %v953
    %v1005 = vxor.u32 %v1004, 2147483648
    %v1006 = vmul.f32 %v1005, 1.442695
    %v1007 = vpow.pop %v1006
    %v1008 = vadd.f32 %v1007, 1.0
    %v1009 = vrcp.pop %v1008
    %v1010 = vmul.f32 1.0, %v1009
    %v1011 = vmul.f32 %v1003, %v992
    %v1012 = vadd.f32 %v507, %v1011
    %v1013 = vtanh.pop %v1012
    %v1014 = vsub.f32 1.0, %v1010
    %v1015 = vmul.f32 %v1014, %v1013
    %v1016 = vmul.f32 %v1010, %v913
    %v1017 = vadd.f32 %v1015, %v1016
    %1018 = vst [vmem:[#allocation2 + $0x10] sm:$0xff] %v1017
    %v1019 = vpack.c.bf16 %v1017, %v1017
    %1020 = vmatprep.subr.bf16.mxu0 %v682
    %1021 = vmatpush1.bf16.msra.mxu0 %v681
    %1022 = vmatprep.subr.bf16.mxu0 %v679
    %1023 = vmatpush1.bf16.msra.mxu0 %v678
    %1024 = vmatprep.subr.bf16.mxu0 %v676
    %1025 = vmatpush1.bf16.msra.mxu0 %v675
    %1026 = vmatprep.subr.bf16.mxu0 %v673
    %1027 = vmatpush1.bf16.msra.mxu0 %v672
    %1028 = vmatprep.subr.bf16.mxu0 %v670
    %1029 = vmatpush1.bf16.msra.mxu0 %v669
    %1030 = vmatprep.subr.bf16.mxu0 %v667
    %1031 = vmatpush1.bf16.msra.mxu0 %v666
    %1032 = vmatprep.subr.bf16.mxu0 %v664
    %1033 = vmatpush1.bf16.msra.mxu0 %v663
    %1034 = vmatprep.subr.bf16.mxu0 %v661
    %1035 = vmatpush1.bf16.msra.mxu0 %v660
    %1036 = vmatprep.subr.bf16.mxu0 0
    %1037 = vmatpush2.bf16.msra.mxu0 0
    %1038 = vmatprep.subr.bf16.mxu0 0
    %1039 = vmatpush2.bf16.msra.mxu0 0
    %1040 = vmatprep.subr.bf16.mxu0 0
    %1041 = vmatpush2.bf16.msra.mxu0 0
    %1042 = vmatprep.subr.bf16.mxu0 0
    %1043 = vmatpush2.bf16.msra.mxu0 0
    %1044 = vmatprep.subr.bf16.mxu0 0
    %1045 = vmatpush2.bf16.msra.mxu0 0
    %1046 = vmatprep.subr.bf16.mxu0 0
    %1047 = vmatpush2.bf16.msra.mxu0 0
    %1048 = vmatprep.subr.bf16.mxu0 0
    %1049 = vmatpush2.bf16.msra.mxu0 0
    %1050 = vmatprep.subr.bf16.mxu0 0
    %1051 = vmatpush2.bf16.msra.mxu0 0
    %1052 = vmatprep.mubr.bf16.mxu0 0
    %1053 = vmatmul.mubr.bf16.gmra.mxu0 %v1019
    %v1054 = vpop.f32.mrf.mxu0
    %v1055 = vadd.f32 %v566, %v1054
    %v1056 = vpop.f32.mrf.mxu0
    %v1057 = vadd.f32 %v570, %v1056
    %v1058 = vpop.f32.mrf.mxu0
    %v1059 = vpop.f32.mrf.mxu0
    %1060 = vdwg.mxu0
    %1061 = vmatprep.subr.bf16.mxu0 0
    %1062 = vmatpush1.bf16.msra.mxu0 %v683
    %1063 = vmatprep.subr.bf16.mxu0 0
    %1064 = vmatpush1.bf16.msra.mxu0 %v680
    %1065 = vmatprep.subr.bf16.mxu0 0
    %1066 = vmatpush1.bf16.msra.mxu0 %v677
    %1067 = vmatprep.subr.bf16.mxu0 0
    %1068 = vmatpush1.bf16.msra.mxu0 %v674
    %1069 = vmatprep.subr.bf16.mxu0 0
    %1070 = vmatpush1.bf16.msra.mxu0 %v671
    %1071 = vmatprep.subr.bf16.mxu0 0
    %1072 = vmatpush1.bf16.msra.mxu0 %v668
    %1073 = vmatprep.subr.bf16.mxu0 0
    %1074 = vmatpush1.bf16.msra.mxu0 %v665
    %1075 = vmatprep.subr.bf16.mxu0 0
    %1076 = vmatpush1.bf16.msra.mxu0 %v662
    %1077 = vmatprep.subr.bf16.mxu0 0
    %1078 = vmatpush2.bf16.msra.mxu0 0
    %1079 = vmatprep.subr.bf16.mxu0 0
    %1080 = vmatpush2.bf16.msra.mxu0 0
    %1081 = vmatprep.subr.bf16.mxu0 0
    %1082 = vmatpush2.bf16.msra.mxu0 0
    %1083 = vmatprep.subr.bf16.mxu0 0
    %1084 = vmatpush2.bf16.msra.mxu0 0
    %1085 = vmatprep.subr.bf16.mxu0 0
    %1086 = vmatpush2.bf16.msra.mxu0 0
    %1087 = vmatprep.subr.bf16.mxu0 0
    %1088 = vmatpush2.bf16.msra.mxu0 0
    %1089 = vmatprep.subr.bf16.mxu0 0
    %1090 = vmatpush2.bf16.msra.mxu0 0
    %1091 = vmatprep.subr.bf16.mxu0 0
    %1092 = vmatpush2.bf16.msra.mxu0 0
    %1093 = vmatprep.mubr.bf16.mxu0 0
    %1094 = vmatmul.mubr.bf16.gmra.mxu0 %v1019
    %v1095 = vpop.f32.mrf.mxu0
    %v1096 = vadd.f32 %v574, %v1095
    %v1097 = vpop.f32.mrf.mxu0
    %v1098 = vpop.f32.mrf.mxu0
    %v1099 = vpop.f32.mrf.mxu0
    %1100 = vdwg.mxu0
    %v1101 = vadd.f32 %v440, %v1055
    %v1102 = vxor.u32 %v1101, 2147483648
    %v1103 = vmul.f32 %v1102, 1.442695
    %v1104 = vpow.pop %v1103
    %v1105 = vadd.f32 %v1104, 1.0
    %v1106 = vrcp.pop %v1105
    %v1107 = vmul.f32 1.0, %v1106
    %v1108 = vadd.f32 %v442, %v1057
    %v1109 = vxor.u32 %v1108, 2147483648
    %v1110 = vmul.f32 %v1109, 1.442695
    %v1111 = vpow.pop %v1110
    %v1112 = vadd.f32 %v1111, 1.0
    %v1113 = vrcp.pop %v1112
    %v1114 = vmul.f32 1.0, %v1113
    %v1115 = vmul.f32 %v1107, %v1096
    %v1116 = vadd.f32 %v510, %v1115
    %v1117 = vtanh.pop %v1116
    %v1118 = vsub.f32 1.0, %v1114
    %v1119 = vmul.f32 %v1118, %v1117
    %v1120 = vmul.f32 %v1114, %v1017
    %v1121 = vadd.f32 %v1119, %v1120
    %1122 = vst [vmem:[#allocation2 + $0x18] sm:$0xff] %v1121
    %v1123 = vpack.c.bf16 %v1121, %v1121
    %1124 = vmatprep.subr.bf16.mxu0 %v682
    %1125 = vmatpush1.bf16.msra.mxu0 %v681
    %1126 = vmatprep.subr.bf16.mxu0 %v679
    %1127 = vmatpush1.bf16.msra.mxu0 %v678
    %1128 = vmatprep.subr.bf16.mxu0 %v676
    %1129 = vmatpush1.bf16.msra.mxu0 %v675
    %1130 = vmatprep.subr.bf16.mxu0 %v673
    %1131 = vmatpush1.bf16.msra.mxu0 %v672
    %1132 = vmatprep.subr.bf16.mxu0 %v670
    %1133 = vmatpush1.bf16.msra.mxu0 %v669
    %1134 = vmatprep.subr.bf16.mxu0 %v667
    %1135 = vmatpush1.bf16.msra.mxu0 %v666
    %1136 = vmatprep.subr.bf16.mxu0 %v664
    %1137 = vmatpush1.bf16.msra.mxu0 %v663
    %1138 = vmatprep.subr.bf16.mxu0 %v661
    %1139 = vmatpush1.bf16.msra.mxu0 %v660
    %1140 = vmatprep.subr.bf16.mxu0 0
    %1141 = vmatpush2.bf16.msra.mxu0 0
    %1142 = vmatprep.subr.bf16.mxu0 0
    %1143 = vmatpush2.bf16.msra.mxu0 0
    %1144 = vmatprep.subr.bf16.mxu0 0
    %1145 = vmatpush2.bf16.msra.mxu0 0
    %1146 = vmatprep.subr.bf16.mxu0 0
    %1147 = vmatpush2.bf16.msra.mxu0 0
    %1148 = vmatprep.subr.bf16.mxu0 0
    %1149 = vmatpush2.bf16.msra.mxu0 0
    %1150 = vmatprep.subr.bf16.mxu0 0
    %1151 = vmatpush2.bf16.msra.mxu0 0
    %1152 = vmatprep.subr.bf16.mxu0 0
    %1153 = vmatpush2.bf16.msra.mxu0 0
    %1154 = vmatprep.subr.bf16.mxu0 0
    %1155 = vmatpush2.bf16.msra.mxu0 0
    %1156 = vmatprep.mubr.bf16.mxu0 0
    %1157 = vmatmul.mubr.bf16.gmra.mxu0 %v1123
    %v1158 = vpop.f32.mrf.mxu0
    %v1159 = vadd.f32 %v566, %v1158
    %v1160 = vpop.f32.mrf.mxu0
    %v1161 = vadd.f32 %v570, %v1160
    %v1162 = vpop.f32.mrf.mxu0
    %v1163 = vpop.f32.mrf.mxu0
    %1164 = vdwg.mxu0
    %1165 = vmatprep.subr.bf16.mxu0 0
    %1166 = vmatpush1.bf16.msra.mxu0 %v683
    %1167 = vmatprep.subr.bf16.mxu0 0
    %1168 = vmatpush1.bf16.msra.mxu0 %v680
    %1169 = vmatprep.subr.bf16.mxu0 0
    %1170 = vmatpush1.bf16.msra.mxu0 %v677
    %1171 = vmatprep.subr.bf16.mxu0 0
    %1172 = vmatpush1.bf16.msra.mxu0 %v674
    %1173 = vmatprep.subr.bf16.mxu0 0
    %1174 = vmatpush1.bf16.msra.mxu0 %v671
    %1175 = vmatprep.subr.bf16.mxu0 0
    %1176 = vmatpush1.bf16.msra.mxu0 %v668
    %1177 = vmatprep.subr.bf16.mxu0 0
    %1178 = vmatpush1.bf16.msra.mxu0 %v665
    %1179 = vmatprep.subr.bf16.mxu0 0
    %1180 = vmatpush1.bf16.msra.mxu0 %v662
    %1181 = vmatprep.subr.bf16.mxu0 0
    %1182 = vmatpush2.bf16.msra.mxu0 0
    %1183 = vmatprep.subr.bf16.mxu0 0
    %1184 = vmatpush2.bf16.msra.mxu0 0
    %1185 = vmatprep.subr.bf16.mxu0 0
    %1186 = vmatpush2.bf16.msra.mxu0 0
    %1187 = vmatprep.subr.bf16.mxu0 0
    %1188 = vmatpush2.bf16.msra.mxu0 0
    %1189 = vmatprep.subr.bf16.mxu0 0
    %1190 = vmatpush2.bf16.msra.mxu0 0
    %1191 = vmatprep.subr.bf16.mxu0 0
    %1192 = vmatpush2.bf16.msra.mxu0 0
    %1193 = vmatprep.subr.bf16.mxu0 0
    %1194 = vmatpush2.bf16.msra.mxu0 0
    %1195 = vmatprep.subr.bf16.mxu0 0
    %1196 = vmatpush2.bf16.msra.mxu0 0
    %1197 = vmatprep.mubr.bf16.mxu0 0
    %1198 = vmatmul.mubr.bf16.gmra.mxu0 %v1123
    %v1199 = vpop.f32.mrf.mxu0
    %v1200 = vadd.f32 %v574, %v1199
    %v1201 = vpop.f32.mrf.mxu0
    %v1202 = vpop.f32.mrf.mxu0
    %v1203 = vpop.f32.mrf.mxu0
    %1204 = vdwg.mxu0
    %v1205 = vadd.f32 %v446, %v1159
    %v1206 = vxor.u32 %v1205, 2147483648
    %v1207 = vmul.f32 %v1206, 1.442695
    %v1208 = vpow.pop %v1207
    %v1209 = vadd.f32 %v1208, 1.0
    %v1210 = vrcp.pop %v1209
    %v1211 = vmul.f32 1.0, %v1210
    %v1212 = vadd.f32 %v448, %v1161
    %v1213 = vxor.u32 %v1212, 2147483648
    %v1214 = vmul.f32 %v1213, 1.442695
    %v1215 = vpow.pop %v1214
    %v1216 = vadd.f32 %v1215, 1.0
    %v1217 = vrcp.pop %v1216
    %v1218 = vmul.f32 1.0, %v1217
    %v1219 = vmul.f32 %v1211, %v1200
    %v1220 = vadd.f32 %v515, %v1219
    %v1221 = vtanh.pop %v1220
    %v1222 = vsub.f32 1.0, %v1218
    %v1223 = vmul.f32 %v1222, %v1221
    %v1224 = vmul.f32 %v1218, %v1121
    %v1225 = vadd.f32 %v1223, %v1224
    %1226 = vst [vmem:[#allocation2 + $0x20] sm:$0xff] %v1225
    %v1227 = vpack.c.bf16 %v1225, %v1225
    %1228 = vmatprep.subr.bf16.mxu0 %v682
    %1229 = vmatpush1.bf16.msra.mxu0 %v681
    %1230 = vmatprep.subr.bf16.mxu0 %v679
    %1231 = vmatpush1.bf16.msra.mxu0 %v678
    %1232 = vmatprep.subr.bf16.mxu0 %v676
    %1233 = vmatpush1.bf16.msra.mxu0 %v675
    %1234 = vmatprep.subr.bf16.mxu0 %v673
    %1235 = vmatpush1.bf16.msra.mxu0 %v672
    %1236 = vmatprep.subr.bf16.mxu0 %v670
    %1237 = vmatpush1.bf16.msra.mxu0 %v669
    %1238 = vmatprep.subr.bf16.mxu0 %v667
    %1239 = vmatpush1.bf16.msra.mxu0 %v666
    %1240 = vmatprep.subr.bf16.mxu0 %v664
    %1241 = vmatpush1.bf16.msra.mxu0 %v663
    %1242 = vmatprep.subr.bf16.mxu0 %v661
    %1243 = vmatpush1.bf16.msra.mxu0 %v660
    %1244 = vmatprep.subr.bf16.mxu0 0
    %1245 = vmatpush2.bf16.msra.mxu0 0
    %1246 = vmatprep.subr.bf16.mxu0 0
    %1247 = vmatpush2.bf16.msra.mxu0 0
    %1248 = vmatprep.subr.bf16.mxu0 0
    %1249 = vmatpush2.bf16.msra.mxu0 0
    %1250 = vmatprep.subr.bf16.mxu0 0
    %1251 = vmatpush2.bf16.msra.mxu0 0
    %1252 = vmatprep.subr.bf16.mxu0 0
    %1253 = vmatpush2.bf16.msra.mxu0 0
    %1254 = vmatprep.subr.bf16.mxu0 0
    %1255 = vmatpush2.bf16.msra.mxu0 0
    %1256 = vmatprep.subr.bf16.mxu0 0
    %1257 = vmatpush2.bf16.msra.mxu0 0
    %1258 = vmatprep.subr.bf16.mxu0 0
    %1259 = vmatpush2.bf16.msra.mxu0 0
    %1260 = vmatprep.mubr.bf16.mxu0 0
    %1261 = vmatmul.mubr.bf16.gmra.mxu0 %v1227
    %v1262 = vpop.f32.mrf.mxu0
    %v1263 = vadd.f32 %v566, %v1262
    %v1264 = vpop.f32.mrf.mxu0
    %v1265 = vadd.f32 %v570, %v1264
    %v1266 = vpop.f32.mrf.mxu0
    %v1267 = vpop.f32.mrf.mxu0
    %1268 = vdwg.mxu0
    %1269 = vmatprep.subr.bf16.mxu0 0
    %1270 = vmatpush1.bf16.msra.mxu0 %v683
    %1271 = vmatprep.subr.bf16.mxu0 0
    %1272 = vmatpush1.bf16.msra.mxu0 %v680
    %1273 = vmatprep.subr.bf16.mxu0 0
    %1274 = vmatpush1.bf16.msra.mxu0 %v677
    %1275 = vmatprep.subr.bf16.mxu0 0
    %1276 = vmatpush1.bf16.msra.mxu0 %v674
    %1277 = vmatprep.subr.bf16.mxu0 0
    %1278 = vmatpush1.bf16.msra.mxu0 %v671
    %1279 = vmatprep.subr.bf16.mxu0 0
    %1280 = vmatpush1.bf16.msra.mxu0 %v668
    %1281 = vmatprep.subr.bf16.mxu0 0
    %1282 = vmatpush1.bf16.msra.mxu0 %v665
    %1283 = vmatprep.subr.bf16.mxu0 0
    %1284 = vmatpush1.bf16.msra.mxu0 %v662
    %1285 = vmatprep.subr.bf16.mxu0 0
    %1286 = vmatpush2.bf16.msra.mxu0 0
    %1287 = vmatprep.subr.bf16.mxu0 0
    %1288 = vmatpush2.bf16.msra.mxu0 0
    %1289 = vmatprep.subr.bf16.mxu0 0
    %1290 = vmatpush2.bf16.msra.mxu0 0
    %1291 = vmatprep.subr.bf16.mxu0 0
    %1292 = vmatpush2.bf16.msra.mxu0 0
    %1293 = vmatprep.subr.bf16.mxu0 0
    %1294 = vmatpush2.bf16.msra.mxu0 0
    %1295 = vmatprep.subr.bf16.mxu0 0
    %1296 = vmatpush2.bf16.msra.mxu0 0
    %1297 = vmatprep.subr.bf16.mxu0 0
    %1298 = vmatpush2.bf16.msra.mxu0 0
    %1299 = vmatprep.subr.bf16.mxu0 0
    %1300 = vmatpush2.bf16.msra.mxu0 0
    %1301 = vmatprep.mubr.bf16.mxu0 0
    %1302 = vmatmul.mubr.bf16.gmra.mxu0 %v1227
    %v1303 = vpop.f32.mrf.mxu0
    %v1304 = vadd.f32 %v574, %v1303
    %v1305 = vpop.f32.mrf.mxu0
    %v1306 = vpop.f32.mrf.mxu0
    %v1307 = vpop.f32.mrf.mxu0
    %1308 = vdwg.mxu0
    %v1309 = vadd.f32 %v450, %v1263
    %v1310 = vxor.u32 %v1309, 2147483648
    %v1311 = vmul.f32 %v1310, 1.442695
    %v1312 = vpow.pop %v1311
    %v1313 = vadd.f32 %v1312, 1.0
    %v1314 = vrcp.pop %v1313
    %v1315 = vmul.f32 1.0, %v1314
    %v1316 = vadd.f32 %v452, %v1265
    %v1317 = vxor.u32 %v1316, 2147483648
    %v1318 = vmul.f32 %v1317, 1.442695
    %v1319 = vpow.pop %v1318
    %v1320 = vadd.f32 %v1319, 1.0
    %v1321 = vrcp.pop %v1320
    %v1322 = vmul.f32 1.0, %v1321
    %v1323 = vmul.f32 %v1315, %v1304
    %v1324 = vadd.f32 %v518, %v1323
    %v1325 = vtanh.pop %v1324
    %v1326 = vsub.f32 1.0, %v1322
    %v1327 = vmul.f32 %v1326, %v1325
    %v1328 = vmul.f32 %v1322, %v1225
    %v1329 = vadd.f32 %v1327, %v1328
    %1330 = vst [vmem:[#allocation2 + $0x28] sm:$0xff] %v1329
    %v1331 = vpack.c.bf16 %v1329, %v1329
    %1332 = vmatprep.subr.bf16.mxu0 %v682
    %1333 = vmatpush1.bf16.msra.mxu0 %v681
    %1334 = vmatprep.subr.bf16.mxu0 %v679
    %1335 = vmatpush1.bf16.msra.mxu0 %v678
    %1336 = vmatprep.subr.bf16.mxu0 %v676
    %1337 = vmatpush1.bf16.msra.mxu0 %v675
    %1338 = vmatprep.subr.bf16.mxu0 %v673
    %1339 = vmatpush1.bf16.msra.mxu0 %v672
    %1340 = vmatprep.subr.bf16.mxu0 %v670
    %1341 = vmatpush1.bf16.msra.mxu0 %v669
    %1342 = vmatprep.subr.bf16.mxu0 %v667
    %1343 = vmatpush1.bf16.msra.mxu0 %v666
    %1344 = vmatprep.subr.bf16.mxu0 %v664
    %1345 = vmatpush1.bf16.msra.mxu0 %v663
    %1346 = vmatprep.subr.bf16.mxu0 %v661
    %1347 = vmatpush1.bf16.msra.mxu0 %v660
    %1348 = vmatprep.subr.bf16.mxu0 0
    %1349 = vmatpush2.bf16.msra.mxu0 0
    %1350 = vmatprep.subr.bf16.mxu0 0
    %1351 = vmatpush2.bf16.msra.mxu0 0
    %1352 = vmatprep.subr.bf16.mxu0 0
    %1353 = vmatpush2.bf16.msra.mxu0 0
    %1354 = vmatprep.subr.bf16.mxu0 0
    %1355 = vmatpush2.bf16.msra.mxu0 0
    %1356 = vmatprep.subr.bf16.mxu0 0
    %1357 = vmatpush2.bf16.msra.mxu0 0
    %1358 = vmatprep.subr.bf16.mxu0 0
    %1359 = vmatpush2.bf16.msra.mxu0 0
    %1360 = vmatprep.subr.bf16.mxu0 0
    %1361 = vmatpush2.bf16.msra.mxu0 0
    %1362 = vmatprep.subr.bf16.mxu0 0
    %1363 = vmatpush2.bf16.msra.mxu0 0
    %1364 = vmatprep.mubr.bf16.mxu0 0
    %1365 = vmatmul.mubr.bf16.gmra.mxu0 %v1331
    %v1366 = vpop.f32.mrf.mxu0
    %v1367 = vadd.f32 %v566, %v1366
    %v1368 = vpop.f32.mrf.mxu0
    %v1369 = vadd.f32 %v570, %v1368
    %v1370 = vpop.f32.mrf.mxu0
    %v1371 = vpop.f32.mrf.mxu0
    %1372 = vdwg.mxu0
    %1373 = vmatprep.subr.bf16.mxu0 0
    %1374 = vmatpush1.bf16.msra.mxu0 %v683
    %1375 = vmatprep.subr.bf16.mxu0 0
    %1376 = vmatpush1.bf16.msra.mxu0 %v680
    %1377 = vmatprep.subr.bf16.mxu0 0
    %1378 = vmatpush1.bf16.msra.mxu0 %v677
    %1379 = vmatprep.subr.bf16.mxu0 0
    %1380 = vmatpush1.bf16.msra.mxu0 %v674
    %1381 = vmatprep.subr.bf16.mxu0 0
    %1382 = vmatpush1.bf16.msra.mxu0 %v671
    %1383 = vmatprep.subr.bf16.mxu0 0
    %1384 = vmatpush1.bf16.msra.mxu0 %v668
    %1385 = vmatprep.subr.bf16.mxu0 0
    %1386 = vmatpush1.bf16.msra.mxu0 %v665
    %1387 = vmatprep.subr.bf16.mxu0 0
    %1388 = vmatpush1.bf16.msra.mxu0 %v662
    %1389 = vmatprep.subr.bf16.mxu0 0
    %1390 = vmatpush2.bf16.msra.mxu0 0
    %1391 = vmatprep.subr.bf16.mxu0 0
    %1392 = vmatpush2.bf16.msra.mxu0 0
    %1393 = vmatprep.subr.bf16.mxu0 0
    %1394 = vmatpush2.bf16.msra.mxu0 0
    %1395 = vmatprep.subr.bf16.mxu0 0
    %1396 = vmatpush2.bf16.msra.mxu0 0
    %1397 = vmatprep.subr.bf16.mxu0 0
    %1398 = vmatpush2.bf16.msra.mxu0 0
    %1399 = vmatprep.subr.bf16.mxu0 0
    %1400 = vmatpush2.bf16.msra.mxu0 0
    %1401 = vmatprep.subr.bf16.mxu0 0
    %1402 = vmatpush2.bf16.msra.mxu0 0
    %1403 = vmatprep.subr.bf16.mxu0 0
    %1404 = vmatpush2.bf16.msra.mxu0 0
    %1405 = vmatprep.mubr.bf16.mxu0 0
    %1406 = vmatmul.mubr.bf16.gmra.mxu0 %v1331
    %v1407 = vpop.f32.mrf.mxu0
    %v1408 = vadd.f32 %v574, %v1407
    %v1409 = vpop.f32.mrf.mxu0
    %v1410 = vpop.f32.mrf.mxu0
    %v1411 = vpop.f32.mrf.mxu0
    %1412 = vdwg.mxu0
    %v1413 = vadd.f32 %v456, %v1367
    %v1414 = vxor.u32 %v1413, 2147483648
    %v1415 = vmul.f32 %v1414, 1.442695
    %v1416 = vpow.pop %v1415
    %v1417 = vadd.f32 %v1416, 1.0
    %v1418 = vrcp.pop %v1417
    %v1419 = vmul.f32 1.0, %v1418
    %v1420 = vadd.f32 %v458, %v1369
    %v1421 = vxor.u32 %v1420, 2147483648
    %v1422 = vmul.f32 %v1421, 1.442695
    %v1423 = vpow.pop %v1422
    %v1424 = vadd.f32 %v1423, 1.0
    %v1425 = vrcp.pop %v1424
    %v1426 = vmul.f32 1.0, %v1425
    %v1427 = vmul.f32 %v1419, %v1408
    %v1428 = vadd.f32 %v523, %v1427
    %v1429 = vtanh.pop %v1428
    %v1430 = vsub.f32 1.0, %v1426
    %v1431 = vmul.f32 %v1430, %v1429
    %v1432 = vmul.f32 %v1426, %v1329
    %v1433 = vadd.f32 %v1431, %v1432
    %1434 = vst [vmem:[#allocation2 + $0x30] sm:$0xff] %v1433
    %v1435 = vpack.c.bf16 %v1433, %v1433
    %1436 = vmatprep.subr.bf16.mxu0 %v682
    %1437 = vmatpush1.bf16.msra.mxu0 %v681
    %1438 = vmatprep.subr.bf16.mxu0 %v679
    %1439 = vmatpush1.bf16.msra.mxu0 %v678
    %1440 = vmatprep.subr.bf16.mxu0 %v676
    %1441 = vmatpush1.bf16.msra.mxu0 %v675
    %1442 = vmatprep.subr.bf16.mxu0 %v673
    %1443 = vmatpush1.bf16.msra.mxu0 %v672
    %1444 = vmatprep.subr.bf16.mxu0 %v670
    %1445 = vmatpush1.bf16.msra.mxu0 %v669
    %1446 = vmatprep.subr.bf16.mxu0 %v667
    %1447 = vmatpush1.bf16.msra.mxu0 %v666
    %1448 = vmatprep.subr.bf16.mxu0 %v664
    %1449 = vmatpush1.bf16.msra.mxu0 %v663
    %1450 = vmatprep.subr.bf16.mxu0 %v661
    %1451 = vmatpush1.bf16.msra.mxu0 %v660
    %1452 = vmatprep.subr.bf16.mxu0 0
    %1453 = vmatpush2.bf16.msra.mxu0 0
    %1454 = vmatprep.subr.bf16.mxu0 0
    %1455 = vmatpush2.bf16.msra.mxu0 0
    %1456 = vmatprep.subr.bf16.mxu0 0
    %1457 = vmatpush2.bf16.msra.mxu0 0
    %1458 = vmatprep.subr.bf16.mxu0 0
    %1459 = vmatpush2.bf16.msra.mxu0 0
    %1460 = vmatprep.subr.bf16.mxu0 0
    %1461 = vmatpush2.bf16.msra.mxu0 0
    %1462 = vmatprep.subr.bf16.mxu0 0
    %1463 = vmatpush2.bf16.msra.mxu0 0
    %1464 = vmatprep.subr.bf16.mxu0 0
    %1465 = vmatpush2.bf16.msra.mxu0 0
    %1466 = vmatprep.subr.bf16.mxu0 0
    %1467 = vmatpush2.bf16.msra.mxu0 0
    %1468 = vmatprep.mubr.bf16.mxu0 0
    %1469 = vmatmul.mubr.bf16.gmra.mxu0 %v1435
    %v1470 = vpop.f32.mrf.mxu0
    %v1471 = vadd.f32 %v566, %v1470
    %v1472 = vpop.f32.mrf.mxu0
    %v1473 = vadd.f32 %v570, %v1472
    %v1474 = vpop.f32.mrf.mxu0
    %v1475 = vpop.f32.mrf.mxu0
    %1476 = vdwg.mxu0
    %1477 = vmatprep.subr.bf16.mxu0 0
    %1478 = vmatpush1.bf16.msra.mxu0 %v683
    %1479 = vmatprep.subr.bf16.mxu0 0
    %1480 = vmatpush1.bf16.msra.mxu0 %v680
    %1481 = vmatprep.subr.bf16.mxu0 0
    %1482 = vmatpush1.bf16.msra.mxu0 %v677
    %1483 = vmatprep.subr.bf16.mxu0 0
    %1484 = vmatpush1.bf16.msra.mxu0 %v674
    %1485 = vmatprep.subr.bf16.mxu0 0
    %1486 = vmatpush1.bf16.msra.mxu0 %v671
    %1487 = vmatprep.subr.bf16.mxu0 0
    %1488 = vmatpush1.bf16.msra.mxu0 %v668
    %1489 = vmatprep.subr.bf16.mxu0 0
    %1490 = vmatpush1.bf16.msra.mxu0 %v665
    %1491 = vmatprep.subr.bf16.mxu0 0
    %1492 = vmatpush1.bf16.msra.mxu0 %v662
    %1493 = vmatprep.subr.bf16.mxu0 0
    %1494 = vmatpush2.bf16.msra.mxu0 0
    %1495 = vmatprep.subr.bf16.mxu0 0
    %1496 = vmatpush2.bf16.msra.mxu0 0
    %1497 = vmatprep.subr.bf16.mxu0 0
    %1498 = vmatpush2.bf16.msra.mxu0 0
    %1499 = vmatprep.subr.bf16.mxu0 0
    %1500 = vmatpush2.bf16.msra.mxu0 0
    %1501 = vmatprep.subr.bf16.mxu0 0
    %1502 = vmatpush2.bf16.msra.mxu0 0
    %1503 = vmatprep.subr.bf16.mxu0 0
    %1504 = vmatpush2.bf16.msra.mxu0 0
    %1505 = vmatprep.subr.bf16.mxu0 0
    %1506 = vmatpush2.bf16.msra.mxu0 0
    %1507 = vmatprep.subr.bf16.mxu0 0
    %1508 = vmatpush2.bf16.msra.mxu0 0
    %1509 = vmatprep.mubr.bf16.mxu0 0
    %1510 = vmatmul.mubr.bf16.gmra.mxu0 %v1435
    %v1511 = vpop.f32.mrf.mxu0
    %v1512 = vadd.f32 %v574, %v1511
    %v1513 = vpop.f32.mrf.mxu0
    %v1514 = vpop.f32.mrf.mxu0
    %v1515 = vpop.f32.mrf.mxu0
    %1516 = vdwg.mxu0
    %v1517 = vadd.f32 %v460, %v1471
    %v1518 = vxor.u32 %v1517, 2147483648
    %v1519 = vmul.f32 %v1518, 1.442695
    %v1520 = vpow.pop %v1519
    %v1521 = vadd.f32 %v1520, 1.0
    %v1522 = vrcp.pop %v1521
    %v1523 = vmul.f32 1.0, %v1522
    %v1524 = vadd.f32 %v462, %v1473
    %v1525 = vxor.u32 %v1524, 2147483648
    %v1526 = vmul.f32 %v1525, 1.442695
    %v1527 = vpow.pop %v1526
    %v1528 = vadd.f32 %v1527, 1.0
    %v1529 = vrcp.pop %v1528
    %v1530 = vmul.f32 1.0, %v1529
    %v1531 = vmul.f32 %v1523, %v1512
    %v1532 = vadd.f32 %v526, %v1531
    %v1533 = vtanh.pop %v1532
    %v1534 = vsub.f32 1.0, %v1530
    %v1535 = vmul.f32 %v1534, %v1533
    %v1536 = vmul.f32 %v1530, %v1433
    %v1537 = vadd.f32 %v1535, %v1536
    %1538 = vst [vmem:[#allocation2 + $0x38] sm:$0xff] %v1537
    %1539 = vst [vmem:[#allocation10] sm:$0xff] %v1537
    %v1540 = vld [vmem:[#allocation2] sm:$0xff]
    %v1541 = vld [vmem:[#allocation2 + $0x8] sm:$0xff]
    %v1542 = vld [vmem:[#allocation2 + $0x10] sm:$0xff]
    %v1543 = vld [vmem:[#allocation2 + $0x18] sm:$0xff]
    %v1544 = vld [vmem:[#allocation2 + $0x20] sm:$0xff]
    %v1545 = vld [vmem:[#allocation2 + $0x28] sm:$0xff]
    %v1546 = vld [vmem:[#allocation2 + $0x30] sm:$0xff]
    %v1547 = vld [vmem:[#allocation2 + $0x38] sm:$0xff]
    %v1548 = vpack.c.bf16 %v1541, %v1540
    %v1549 = vpack.c.bf16 %v1543, %v1542
    %v1550 = vpack.c.bf16 %v1545, %v1544
    %v1551 = vpack.c.bf16 %v1547, %v1546
    %v1552 = vld [vmem:[#allocation8] sm:$0xf]
    %v1553 = vld [vmem:[#allocation8 + $0x4] sm:$0xf]
    %v1554 = vld [vmem:[#allocation8 + $0x8] sm:$0xf]
    %v1555 = vld [vmem:[#allocation8 + $0xc] sm:$0xf]
    %v1556 = vld [vmem:[#allocation8 + $0x10] sm:$0xf]
    %v1557 = vld [vmem:[#allocation8 + $0x14] sm:$0xf]
    %v1558 = vld [vmem:[#allocation8 + $0x18] sm:$0xf]
    %v1559 = vld [vmem:[#allocation8 + $0x1c] sm:$0xf]
    %v1560 = vld [vmem:[#allocation8 + $0x20] sm:$0xf]
    %v1561 = vld [vmem:[#allocation8 + $0x24] sm:$0xf]
    %v1562 = vld [vmem:[#allocation8 + $0x28] sm:$0xf]
    %v1563 = vld [vmem:[#allocation8 + $0x2c] sm:$0xf]
    %v1564 = vld [vmem:[#allocation8 + $0x30] sm:$0xf]
    %v1565 = vld [vmem:[#allocation8 + $0x34] sm:$0xf]
    %v1566 = vld [vmem:[#allocation8 + $0x38] sm:$0xf]
    %v1567 = vld [vmem:[#allocation8 + $0x3c] sm:$0xf]
    %v1568 = vld [vmem:[%s9] sm:$0x1]
    %v1570 = vlaneseq
    %v1571 = vshrl.u32 %v1570, 7
    %v1572 = vsub.s32 0, %v1571
    %v1573 = vrot.slane %v1568, %v1572
    %v1591 = vunpack.c.l.b16 %v1552
    %v1592 = vunpack.c.l.b16 %v1553
    %v1593 = vunpack.c.l.b16 %v1554
    %v1594 = vunpack.c.l.b16 %v1555
    %v1595 = vunpack.c.l.b16 %v1556
    %v1596 = vunpack.c.l.b16 %v1557
    %v1597 = vunpack.c.l.b16 %v1558
    %v1598 = vunpack.c.l.b16 %v1559
    %v1599 = vunpack.c.l.b16 %v1560
    %v1600 = vunpack.c.l.b16 %v1561
    %v1601 = vunpack.c.l.b16 %v1562
    %v1602 = vunpack.c.l.b16 %v1563
    %v1603 = vunpack.c.l.b16 %v1564
    %v1604 = vunpack.c.l.b16 %v1565
    %v1605 = vunpack.c.l.b16 %v1566
    %v1606 = vunpack.c.l.b16 %v1567
    %v1607 = vpack.c.b16 %v1592, %v1591
    %v1608 = vpack.c.b16 %v1594, %v1593
    %v1609 = vpack.c.b16 %v1596, %v1595
    %v1610 = vpack.c.b16 %v1598, %v1597
    %v1611 = vpack.c.b16 %v1600, %v1599
    %v1612 = vpack.c.b16 %v1602, %v1601
    %v1613 = vpack.c.b16 %v1604, %v1603
    %v1614 = vpack.c.b16 %v1606, %v1605
    %1623 = vmatprep.subr.bf16.mxu0 0
    %1624 = vmatpush1.bf16.msra.mxu0 %v1614
    %1625 = vmatprep.subr.bf16.mxu0 0
    %1626 = vmatpush1.bf16.msra.mxu0 %v1613
    %1627 = vmatprep.subr.bf16.mxu0 0
    %1628 = vmatpush1.bf16.msra.mxu0 %v1612
    %1629 = vmatprep.subr.bf16.mxu0 0
    %1630 = vmatpush1.bf16.msra.mxu0 %v1611
    %1631 = vmatprep.subr.bf16.mxu0 0
    %1632 = vmatpush1.bf16.msra.mxu0 %v1610
    %1633 = vmatprep.subr.bf16.mxu0 0
    %1634 = vmatpush1.bf16.msra.mxu0 %v1609
    %1635 = vmatprep.subr.bf16.mxu0 0
    %1636 = vmatpush1.bf16.msra.mxu0 %v1608
    %1637 = vmatprep.subr.bf16.mxu0 0
    %1638 = vmatpush1.bf16.msra.mxu0 %v1607
    %1639 = vmatprep.subr.bf16.mxu0 0
    %1640 = vmatpush2.bf16.msra.mxu0 0
    %1641 = vmatprep.subr.bf16.mxu0 0
    %1642 = vmatpush2.bf16.msra.mxu0 0
    %1643 = vmatprep.subr.bf16.mxu0 0
    %1644 = vmatpush2.bf16.msra.mxu0 0
    %1645 = vmatprep.subr.bf16.mxu0 0
    %1646 = vmatpush2.bf16.msra.mxu0 0
    %1647 = vmatprep.subr.bf16.mxu0 0
    %1648 = vmatpush2.bf16.msra.mxu0 0
    %1649 = vmatprep.subr.bf16.mxu0 0
    %1650 = vmatpush2.bf16.msra.mxu0 0
    %1651 = vmatprep.subr.bf16.mxu0 0
    %1652 = vmatpush2.bf16.msra.mxu0 0
    %1653 = vmatprep.subr.bf16.mxu0 0
    %1654 = vmatpush2.bf16.msra.mxu0 0
    %1655 = vmatprep.mubr.bf16.mxu0 0
    %1656 = vmatmul.mubr.bf16.gmra.mxu0 %v1548
    %v1657 = vpop.f32.mrf.mxu0
    %v1658 = vadd.f32 %v1573, %v1657
    %v1659 = vpop.f32.mrf.mxu0
    %v1660 = vpop.f32.mrf.mxu0
    %v1661 = vadd.f32 %v1573, %v1660
    %v1662 = vpop.f32.mrf.mxu0
    %1663 = vmatprep.mubr.bf16.mxu0 0
    %1664 = vmatmul.mubr.bf16.gmra.mxu0 %v1549
    %v1665 = vpop.f32.mrf.mxu0
    %v1666 = vadd.f32 %v1573, %v1665
    %v1667 = vpop.f32.mrf.mxu0
    %v1668 = vpop.f32.mrf.mxu0
    %v1669 = vadd.f32 %v1573, %v1668
    %v1670 = vpop.f32.mrf.mxu0
    %1671 = vmatprep.mubr.bf16.mxu0 0
    %1672 = vmatmul.mubr.bf16.gmra.mxu0 %v1550
    %v1673 = vpop.f32.mrf.mxu0
    %v1674 = vadd.f32 %v1573, %v1673
    %v1675 = vpop.f32.mrf.mxu0
    %v1676 = vpop.f32.mrf.mxu0
    %v1677 = vadd.f32 %v1573, %v1676
    %v1678 = vpop.f32.mrf.mxu0
    %1679 = vmatprep.mubr.bf16.mxu0 0
    %1680 = vmatmul.mubr.bf16.gmra.mxu0 %v1551
    %v1681 = vpop.f32.mrf.mxu0
    %v1682 = vadd.f32 %v1573, %v1681
    %v1683 = vpop.f32.mrf.mxu0
    %v1684 = vpop.f32.mrf.mxu0
    %v1685 = vadd.f32 %v1573, %v1684
    %v1686 = vpop.f32.mrf.mxu0
    %1687 = vdwg.mxu0
    %1688 = vst [vmem:[#allocation9] sm:$0xff] %v1658
    %1689 = vst [vmem:[#allocation9 + $0x8] sm:$0xff] %v1661
    %1690 = vst [vmem:[#allocation9 + $0x10] sm:$0xff] %v1666
    %1691 = vst [vmem:[#allocation9 + $0x18] sm:$0xff] %v1669
    %1692 = vst [vmem:[#allocation9 + $0x20] sm:$0xff] %v1674
    %1693 = vst [vmem:[#allocation9 + $0x28] sm:$0xff] %v1677
    %1694 = vst [vmem:[#allocation9 + $0x30] sm:$0xff] %v1682
    %1695 = vst [vmem:[#allocation9 + $0x38] sm:$0xff] %v1685
    // Predicated region
    $region54: #{tpu_custom_call.1} parent=1 // pred_check
      _
    $region55: #{tpu_custom_call.1} parent=1 // pred_check_branch
      %1697 = sbr.rel (0) target = $region57
    $region56: #{tpu_custom_call.1} parent=1 // pred_region
      %s1699 = ssub.s32 1024, 1024
      %1700 = vsyncadd [#allocation5], %s1699
      %s1701 = sshll.u32 [#allocation9], 4
      %s1702 = int_to_ptr.vmem [resolvable:$true] %s1701
      %1707 = dma.vmem_to_hbm [thread:$0]  %s1702, 1024, %s10, [#allocation5], 128, 128, 8
    $region57: #{tpu_custom_call.1} parent=1 // pred_fallthru
      _
    // Predicated region
    $region58: #{tpu_custom_call.1} parent=1 // pred_check
      _
    $region59: #{tpu_custom_call.1} parent=1 // pred_check_branch
      %1709 = sbr.rel (0) target = $region61
    $region60: #{tpu_custom_call.1} parent=1 // pred_region
      %s1711 = ssub.s32 128, 128
      %1712 = vsyncadd [#allocation11], %s1711
      %s1714 = sshll.u32 [#allocation10], 4
      %s1715 = int_to_ptr.vmem [resolvable:$true] %s1714
      %1717 = dma.vmem_to_hbm [thread:$0]  %s1715, 128, %s11, [#allocation11]
    $region61: #{tpu_custom_call.1} parent=1 // pred_fallthru
      _
    // Predicated region
    $region62: #{tpu_custom_call.1} parent=1 // pred_check
      _
    $region63: #{tpu_custom_call.1} parent=1 // pred_check_branch
      %1719 = sbr.rel (0) target = $region65
    $region64: #{tpu_custom_call.1} parent=1 // pred_region
      %1720 = dma.done [#allocation5], 1024
    $region65: #{tpu_custom_call.1} parent=1 // pred_fallthru
      _
    // Predicated region
    $region66: #{tpu_custom_call.1} parent=1 // pred_check
      _
    $region67: #{tpu_custom_call.1} parent=1 // pred_check_branch
      %1722 = sbr.rel (0) target = $region69
    $region68: #{tpu_custom_call.1} parent=1 // pred_region
      %1723 = dma.done [#allocation11], 128
    $region69: #{tpu_custom_call.1} parent=1 // pred_fallthru
      _
    %1724 = vsyncpa [#allocation4], 1
    %1725 = vsyncpa [#allocation7], 1
    %1726 = vsyncpa [#allocation5], 1
    %1727 = vsyncpa [#allocation11], 1

</llo_original>
